<compile_context>
chip_gen: v6e
topology: v6e:2x2x1
jax: 0.10.0
libtpu: 0.0.40
codegen_flags: <defaults>
</compile_context>

<pallas_src>
import functools
import math

import jax
import jax.numpy as jnp
import numpy as np
from jax.experimental import pallas as pl
from jax.experimental.pallas import tpu as pltpu

NUM_FREQ_CHANNELS = 256          # Timesteps(num_channels=256, ...)
HALF_DIM = NUM_FREQ_CHANNELS // 2
_LOG_MAX_PERIOD = math.log(10000.0)
_HALF_PI = 0.5 * math.pi


def _round_up(x, m):
    return ((x + m - 1) // m) * m


def _default_fuse_k256():
    """Use a K=256 first-layer operand on 256-deep MXUs (v6e/v7x); K=128 split
    elsewhere (v5e and older have 128-deep MXUs, already filled by K=128)."""
    try:
        kind = jax.devices()[0].device_kind.lower()
    except Exception:
        return False
    return ("v6" in kind) or ("v7" in kind) or ("tpu7" in kind)


# ----------------------------- kernel helpers ----------------------------------
def _silu(h):
    # exp + reciprocal both issue on the EUP slot; exact reciprocal is ~free here.
    return h * pl.reciprocal(1.0 + jnp.exp(-h), approx=False)


def _layer1(vals_col, w1_ref, b1_ref, fuse_k256):
    """Sinusoidal projection (flip_sin_to_cos=True, downscale_freq_shift=0,
    scale=1, max_period=1e4) fused with the packed first Linear layer.

    vals_col: (N, 1) f32; w1_ref: (256, F) bf16 with rows [cos-half | sin-half];
    b1_ref: (1, F) f32.  Returns (N, F) f32.
    """
    half = HALF_DIM
    mxu = w1_ref.dtype
    if fuse_k256:
        # One K=256 operand: lanes [0:128)=cos(ang), [128:256)=sin(ang), built
        # without a lane concat via sin(x) == cos(x - pi/2).
        k = jax.lax.broadcasted_iota(jnp.int32, (1, 2 * half), 1)
        freqs = jnp.exp((k & (half - 1)).astype(jnp.float32) *
                        (-_LOG_MAX_PERIOD / half))
        phase = jnp.where(k >= half, jnp.float32(_HALF_PI), jnp.float32(0.0))
        proj = jnp.cos(vals_col * freqs - phase).astype(mxu)            # (N, 256)
        h = jnp.dot(proj, w1_ref[...], preferred_element_type=jnp.float32)
    else:
        # Two K=128 dots against the cos / sin halves (fills a 128-deep MXU).
        k = jax.lax.broadcasted_iota(jnp.int32, (1, half), 1).astype(jnp.float32)
        freqs = jnp.exp(k * (-_LOG_MAX_PERIOD / half))
        ang = vals_col * freqs                                          # (N, 128)
        h = (jnp.dot(jnp.cos(ang).astype(mxu), w1_ref[0:half, :],
                     preferred_element_type=jnp.float32)
             + jnp.dot(jnp.sin(ang).astype(mxu), w1_ref[half:2 * half, :],
                       preferred_element_type=jnp.float32))
    return h + b1_ref[...]


# ------------------------------- fused kernel ----------------------------------
def _fused_kernel(t_ref, res_ref, ar_ref, w1_ref, b1_ref,
                  w2t_hbm, b2t_ref, w2r_hbm, b2r_ref, w2a_hbm, b2a_ref,
                  out_ref,
                  vals_sc, w2t_sc, w2r_sc, w2a_sc, sems,
                  *, batch, batch_pad, fuse_k256):
    """t_ref (B,1) f32, res_ref (B,2) f32 [h,w], ar_ref (B,1) f32.
       w1_ref (256, D+2S) bf16, b1_ref (1, D+2S) f32.
       w2*_hbm: HBM refs (pl.ANY), prefetched into w2*_sc VMEM scratch.
       out_ref (B, D) with D == 3*S."""
    B, Bp = batch, batch_pad
    D = w2t_sc.shape[0]
    S = w2r_sc.shape[0]
    mxu = w2t_sc.dtype

    # 1) Start the second-layer weight DMAs; they overlap layer-1 compute.
    cp_t = pltpu.make_async_copy(w2t_hbm, w2t_sc, sems.at[0]); cp_t.start()
    cp_r = pltpu.make_async_copy(w2r_hbm, w2r_sc, sems.at[1]); cp_r.start()
    cp_a = pltpu.make_async_copy(w2a_hbm, w2a_sc, sems.at[2]); cp_a.start()

    # 2) Assemble the sublane-aligned packed scalar column in VMEM:
    #    rows [0:Bp)=timesteps, [Bp:2Bp)=heights, [2Bp:3Bp)=widths,
    #    [3Bp:4Bp)=aspect ratios (pad rows zeroed, results never read).
    vals_sc[...] = jnp.zeros_like(vals_sc)
    vals_sc[0:B, :] = t_ref[...]
    vals_sc[Bp:Bp + B, :] = res_ref[:, 0:1]
    vals_sc[2 * Bp:2 * Bp + B, :] = res_ref[:, 1:2]
    vals_sc[3 * Bp:3 * Bp + B, :] = ar_ref[...]

    # 3) First layer of all three embedders as one wide MXU pass + SiLU.
    h = _layer1(vals_sc[...], w1_ref, b1_ref, fuse_k256)     # (4Bp, D+2S) f32
    a = _silu(h)

    # 4) Second layer: each embedder owns one sublane/lane-aligned block.
    a_t = a[0:Bp, 0:D].astype(mxu)                           # timestep rows
    a_hw = a[Bp:3 * Bp, D:D + S].astype(mxu)                 # height + width rows
    a_a = a[3 * Bp:4 * Bp, D + S:D + 2 * S].astype(mxu)      # aspect-ratio rows

    # Weights must have landed before the second-layer dots.
    cp_t.wait(); cp_r.wait(); cp_a.wait()

    o_t = jnp.dot(a_t, w2t_sc[...], preferred_element_type=jnp.float32) + b2t_ref[...]
    o_hw = jnp.dot(a_hw, w2r_sc[...], preferred_element_type=jnp.float32) + b2r_ref[...]
    o_a = jnp.dot(a_a, w2a_sc[...], preferred_element_type=jnp.float32) + b2a_ref[...]

    # 5) conditioning = t_emb + [h_emb | w_emb | ar_emb]; store each 128-aligned
    #    lane range directly (no concat / reshape in-kernel).
    out_ref[:, 0:S] = (o_t[0:B, 0:S] + o_hw[0:B]).astype(out_ref.dtype)
    out_ref[:, S:2 * S] = (o_t[0:B, S:2 * S] + o_hw[Bp:Bp + B]).astype(out_ref.dtype)
    out_ref[:, 2 * S:3 * S] = (o_t[0:B, 2 * S:3 * S] + o_a[0:B]).astype(out_ref.dtype)


def _timestep_only_kernel(t_ref, w1_ref, b1_ref, w2_hbm, b2_ref,
                          out_ref, w2_sc, sems, *, fuse_k256):
    """use_additional_conditions=False path: one sinusoid + MLP."""
    cp = pltpu.make_async_copy(w2_hbm, w2_sc, sems.at[0]); cp.start()
    h = _layer1(t_ref[...], w1_ref, b1_ref, fuse_k256)
    a = _silu(h).astype(w2_sc.dtype)
    cp.wait()
    o = jnp.dot(a, w2_sc[...], preferred_element_type=jnp.float32) + b2_ref[...]
    out_ref[...] = o.astype(out_ref.dtype)


# ------------------------------ param packing ----------------------------------
def pack_params(params, use_additional_conditions=True, mxu_dtype=jnp.bfloat16):
    """One-time repacking. Raw layout: w (in_features, out_features), b (1, out), f32.
    The three first-layer weights are concatenated along the output axis so layer 1
    is one wide matmul; rows [0:128) multiply cos, [128:256) multiply sin."""
    if not use_additional_conditions:
        return dict(w1=params["t_w1"].astype(mxu_dtype),
                    b1=params["t_b1"].astype(jnp.float32),
                    w2t=params["t_w2"].astype(mxu_dtype),
                    b2t=params["t_b2"].astype(jnp.float32))

    w1 = jnp.concatenate([params["t_w1"], params["r_w1"], params["a_w1"]], axis=1)
    b1 = jnp.concatenate([params["t_b1"], params["r_b1"], params["a_b1"]], axis=1)
    return dict(
        w1=w1.astype(mxu_dtype), b1=b1.astype(jnp.float32),
        w2t=params["t_w2"].astype(mxu_dtype), b2t=params["t_b2"].astype(jnp.float32),
        w2r=params["r_w2"].astype(mxu_dtype), b2r=params["r_b2"].astype(jnp.float32),
        w2a=params["a_w2"].astype(mxu_dtype), b2a=params["a_b2"].astype(jnp.float32),
    )


# ---------------------------------- wrapper -------------------------------------
def pixart_combined_timestep_size_embeddings(timestep, resolution, aspect_ratio,
                                             batch_size, packed,
                                             hidden_dtype=jnp.float32,
                                             use_additional_conditions=True,
                                             fuse_k256=None):
    if fuse_k256 is None:
        fuse_k256 = _default_fuse_k256()
    B = int(batch_size)
    D = packed["w2t"].shape[0]
    vmem = pl.BlockSpec(memory_space=pltpu.MemorySpace.VMEM)
    anymem = pl.BlockSpec(memory_space=pl.ANY)   # raw HBM ref, DMA'd in-kernel

    t_col = timestep.reshape(B, 1).astype(jnp.float32)

    if not use_additional_conditions:
        kernel = functools.partial(_timestep_only_kernel, fuse_k256=fuse_k256)
        return pl.pallas_call(
            kernel,
            out_shape=jax.ShapeDtypeStruct((B, D), hidden_dtype),
            in_specs=[vmem, vmem, vmem, anymem, vmem],
            out_specs=vmem,
            scratch_shapes=[pltpu.VMEM((D, D), packed["w2t"].dtype),
                            pltpu.SemaphoreType.DMA((1,))],
        )(t_col, packed["w1"], packed["b1"], packed["w2t"], packed["b2t"])

    S = packed["w2r"].shape[0]
    assert D == 3 * S, "PixArt-Alpha requires embedding_dim == 3 * size_emb_dim"
    Bp = _round_up(B, 8)                               # sublane-aligned row groups

    res_col = resolution.reshape(B, 2).astype(jnp.float32)
    ar_col = aspect_ratio.reshape(B, 1).astype(jnp.float32)

    kernel = functools.partial(_fused_kernel, batch=B, batch_pad=Bp,
                               fuse_k256=fuse_k256)
    # TODO(synk): for large server-side batches on v7x, add a row grid axis with
    # dimension_semantics=("parallel",) so both TensorCores split the rows.
    return pl.pallas_call(
        kernel,
        out_shape=jax.ShapeDtypeStruct((B, D), hidden_dtype),
        in_specs=[vmem, vmem, vmem, vmem, vmem,
                  anymem, vmem, anymem, vmem, anymem, vmem],
        out_specs=vmem,
        scratch_shapes=[
            pltpu.VMEM((4 * Bp, 1), jnp.float32),          # packed scalar column
            pltpu.VMEM((D, D), packed["w2t"].dtype),       # prefetched w2 (timestep)
            pltpu.VMEM((S, S), packed["w2r"].dtype),       # prefetched w2 (resolution)
            pltpu.VMEM((S, S), packed["w2a"].dtype),       # prefetched w2 (aspect)
            pltpu.SemaphoreType.DMA((3,)),
        ],
    )(t_col, res_col, ar_col, packed["w1"], packed["b1"],
      packed["w2t"], packed["b2t"], packed["w2r"], packed["b2r"],
      packed["w2a"], packed["b2a"])


# ----------------------------- pure-JAX reference -------------------------------
def _ref_sincos(t):
    freqs = jnp.exp(-_LOG_MAX_PERIOD *
                    jnp.arange(HALF_DIM, dtype=jnp.float32) / HALF_DIM)
    ang = t.astype(jnp.float32)[:, None] * freqs[None, :]
    return jnp.concatenate([jnp.cos(ang), jnp.sin(ang)], axis=-1)  # flip_sin_to_cos


def _ref_mlp(x, w1, b1, w2, b2):
    h = jnp.dot(x, w1, precision=jax.lax.Precision.HIGHEST) + b1
    h = h * jax.nn.sigmoid(h)
    return jnp.dot(h, w2, precision=jax.lax.Precision.HIGHEST) + b2


def _ref_forward(timestep, resolution, aspect_ratio, batch_size, params):
    t_emb = _ref_mlp(_ref_sincos(timestep),
                     params["t_w1"], params["t_b1"], params["t_w2"], params["t_b2"])
    r_emb = _ref_mlp(_ref_sincos(resolution.reshape(-1)),
                     params["r_w1"], params["r_b1"], params["r_w2"], params["r_b2"])
    a_emb = _ref_mlp(_ref_sincos(aspect_ratio.reshape(-1)),
                     params["a_w1"], params["a_b1"], params["a_w2"], params["a_b2"])
    extra = jnp.concatenate([r_emb.reshape(batch_size, -1),
                             a_emb.reshape(batch_size, -1)], axis=1)
    return t_emb + extra


# ------------------------------------ main ---------------------------------------
if __name__ == "__main__":
    B = 2
    EMBEDDING_DIM = 384           # embedding_dim
    SIZE_EMB_DIM = 128            # size_emb_dim ; embedding_dim == 3 * size_emb_dim
    hidden_dtype = jnp.float32

    key = jax.random.PRNGKey(0)
    ks = jax.random.split(key, 16)

    def init_linear(k, fan_in, fan_out):
        kw, kb = jax.random.split(k)
        w = jax.random.normal(kw, (fan_in, fan_out), jnp.float32) * 0.02
        b = jax.random.normal(kb, (1, fan_out), jnp.float32) * 0.02
        return w, b

    t_w1, t_b1 = init_linear(ks[0], NUM_FREQ_CHANNELS, EMBEDDING_DIM)
    t_w2, t_b2 = init_linear(ks[1], EMBEDDING_DIM, EMBEDDING_DIM)
    r_w1, r_b1 = init_linear(ks[2], NUM_FREQ_CHANNELS, SIZE_EMB_DIM)
    r_w2, r_b2 = init_linear(ks[3], SIZE_EMB_DIM, SIZE_EMB_DIM)
    a_w1, a_b1 = init_linear(ks[4], NUM_FREQ_CHANNELS, SIZE_EMB_DIM)
    a_w2, a_b2 = init_linear(ks[5], SIZE_EMB_DIM, SIZE_EMB_DIM)

    params = dict(t_w1=t_w1, t_b1=t_b1, t_w2=t_w2, t_b2=t_b2,
                  r_w1=r_w1, r_b1=r_b1, r_w2=r_w2, r_b2=r_b2,
                  a_w1=a_w1, a_b1=a_b1, a_w2=a_w2, a_b2=a_b2)
    packed = pack_params(params, use_additional_conditions=True)
    packed_t = pack_params(params, use_additional_conditions=False)

    # inputs: timestep [B], resolution [B, 2] (h, w), aspect_ratio [B, 1]
    timestep = jax.random.uniform(ks[6], (B,), jnp.float32) * 1000.0
    resolution = jnp.asarray([[512.0, 512.0], [768.0, 1024.0]], jnp.float32)
    aspect_ratio = jnp.asarray([[1.0], [0.75]], jnp.float32)

    # Tolerance accounts for bf16 MXU inputs (f32 accumulate) vs the f32-HIGHEST
    # pure-JAX reference.
    ref = _ref_forward(timestep, resolution, aspect_ratio, B, params)

    # Run both K-fill variants (K=128 split and fused K=256) plus the per-chip
    # default; all must compile and match the reference.
    for fuse in (False, True, None):
        fwd = jax.jit(functools.partial(
            pixart_combined_timestep_size_embeddings,
            batch_size=B, packed=packed, hidden_dtype=hidden_dtype,
            use_additional_conditions=True, fuse_k256=fuse))
        conditioning = jax.block_until_ready(fwd(timestep, resolution, aspect_ratio))
        assert conditioning.shape == (B, EMBEDDING_DIM)
        assert conditioning.dtype == hidden_dtype
        np.testing.assert_allclose(np.asarray(conditioning), np.asarray(ref),
                                   rtol=1e-2, atol=1e-2)

    # Regression test for the row-group packing: B > 2, non-square resolutions.
    B2 = 5
    timestep2 = jax.random.uniform(ks[7], (B2,), jnp.float32) * 1000.0
    resolution2 = jnp.stack(
        [jax.random.uniform(ks[8], (B2,), jnp.float32) * 1024.0 + 256.0,
         jax.random.uniform(ks[9], (B2,), jnp.float32) * 1024.0 + 256.0], axis=1)
    aspect2 = jax.random.uniform(ks[10], (B2, 1), jnp.float32) * 1.5 + 0.5
    out2 = jax.block_until_ready(pixart_combined_timestep_size_embeddings(
        timestep2, resolution2, aspect2, B2, packed, hidden_dtype=hidden_dtype,
        use_additional_conditions=True))
    ref2 = _ref_forward(timestep2, resolution2, aspect2, B2, params)
    np.testing.assert_allclose(np.asarray(out2), np.asarray(ref2),
                               rtol=1e-2, atol=1e-2)

    # use_additional_conditions=False path.
    t_only = jax.block_until_ready(pixart_combined_timestep_size_embeddings(
        timestep, None, None, B, packed_t, hidden_dtype=hidden_dtype,
        use_additional_conditions=False))
    ref_t = _ref_mlp(_ref_sincos(timestep), t_w1, t_b1, t_w2, t_b2)
    np.testing.assert_allclose(np.asarray(t_only), np.asarray(ref_t),
                               rtol=1e-2, atol=1e-2)

    print("KERNEL_OK")
</pallas_src>

<mosaic_0001>
module attributes {stable_mosaic.version = 11 : i64} {
  func.func @_fused_kernel(%arg0: memref<2x1xf32, #tpu.memory_space<vmem>>, %arg1: memref<2x2xf32, #tpu.memory_space<vmem>>, %arg2: memref<2x1xf32, #tpu.memory_space<vmem>>, %arg3: memref<256x640xbf16, #tpu.memory_space<vmem>>, %arg4: memref<1x640xf32, #tpu.memory_space<vmem>>, %arg5: memref<384x384xbf16, #tpu.memory_space<any>>, %arg6: memref<1x384xf32, #tpu.memory_space<vmem>>, %arg7: memref<128x128xbf16, #tpu.memory_space<any>>, %arg8: memref<1x128xf32, #tpu.memory_space<vmem>>, %arg9: memref<128x128xbf16, #tpu.memory_space<any>>, %arg10: memref<1x128xf32, #tpu.memory_space<vmem>>, %arg11: memref<2x384xf32, #tpu.memory_space<vmem>>, %arg12: memref<32x1xf32, #tpu.memory_space<vmem>>, %arg13: memref<384x384xbf16, #tpu.memory_space<vmem>>, %arg14: memref<128x128xbf16, #tpu.memory_space<vmem>>, %arg15: memref<128x128xbf16, #tpu.memory_space<vmem>>, %arg16: memref<3x!tpu.dma_semaphore, #tpu.memory_space<semaphore_mem>>) attributes {dimension_semantics = [], scalar_prefetch = 0 : i64, scratch_operands = 5 : i64, tpu.core_type = #tpu.core_type<tc>} {
    %c0_i32 = arith.constant 0 : i32
    %0 = tpu.memref_slice %arg16[%c0_i32] : memref<3x!tpu.dma_semaphore, #tpu.memory_space<semaphore_mem>> -> memref<1x!tpu.dma_semaphore, #tpu.memory_space<semaphore_mem>>
    %1 = tpu.memref_squeeze %0 : memref<1x!tpu.dma_semaphore, #tpu.memory_space<semaphore_mem>> -> memref<!tpu.dma_semaphore, #tpu.memory_space<semaphore_mem>>
    tpu.enqueue_dma source(%arg5 : memref<384x384xbf16, #tpu.memory_space<any>>) target(%arg13 : memref<384x384xbf16, #tpu.memory_space<vmem>>) target_semaphore(%1 : memref<!tpu.dma_semaphore, #tpu.memory_space<semaphore_mem>>)
    %c1_i32 = arith.constant 1 : i32
    %2 = tpu.memref_slice %arg16[%c1_i32] : memref<3x!tpu.dma_semaphore, #tpu.memory_space<semaphore_mem>> -> memref<1x!tpu.dma_semaphore, #tpu.memory_space<semaphore_mem>>
    %3 = tpu.memref_squeeze %2 : memref<1x!tpu.dma_semaphore, #tpu.memory_space<semaphore_mem>> -> memref<!tpu.dma_semaphore, #tpu.memory_space<semaphore_mem>>
    tpu.enqueue_dma source(%arg7 : memref<128x128xbf16, #tpu.memory_space<any>>) target(%arg14 : memref<128x128xbf16, #tpu.memory_space<vmem>>) target_semaphore(%3 : memref<!tpu.dma_semaphore, #tpu.memory_space<semaphore_mem>>)
    %c2_i32 = arith.constant 2 : i32
    %4 = tpu.memref_slice %arg16[%c2_i32] : memref<3x!tpu.dma_semaphore, #tpu.memory_space<semaphore_mem>> -> memref<1x!tpu.dma_semaphore, #tpu.memory_space<semaphore_mem>>
    %5 = tpu.memref_squeeze %4 : memref<1x!tpu.dma_semaphore, #tpu.memory_space<semaphore_mem>> -> memref<!tpu.dma_semaphore, #tpu.memory_space<semaphore_mem>>
    tpu.enqueue_dma source(%arg9 : memref<128x128xbf16, #tpu.memory_space<any>>) target(%arg15 : memref<128x128xbf16, #tpu.memory_space<vmem>>) target_semaphore(%5 : memref<!tpu.dma_semaphore, #tpu.memory_space<semaphore_mem>>)
    %cst = arith.constant 0.000000e+00 : f32
    %6 = vector.broadcast %cst : f32 to vector<32x1xf32>
    %c0 = arith.constant 0 : index
    %c0_0 = arith.constant 0 : index
    %7 = vector.load %arg12[%c0, %c0_0] : memref<32x1xf32, #tpu.memory_space<vmem>>, vector<32x1xf32>
    tpu.vector_store %arg12[%c0, %c0_0], %6 {strides = array<i32>} : memref<32x1xf32, #tpu.memory_space<vmem>>, vector<32x1xf32>,
    %c0_1 = arith.constant 0 : index
    %c0_2 = arith.constant 0 : index
    %8 = vector.load %arg0[%c0_1, %c0_2] : memref<2x1xf32, #tpu.memory_space<vmem>>, vector<2x1xf32>
    %c0_3 = arith.constant 0 : index
    %c0_4 = arith.constant 0 : index
    %9 = vector.load %arg12[%c0_3, %c0_4] : memref<32x1xf32, #tpu.memory_space<vmem>>, vector<2x1xf32>
    tpu.vector_store %arg12[%c0_3, %c0_4], %8 {strides = array<i32>} : memref<32x1xf32, #tpu.memory_space<vmem>>, vector<2x1xf32>,
    %c0_5 = arith.constant 0 : index
    %c0_6 = arith.constant 0 : index
    %10 = vector.load %arg1[%c0_5, %c0_6] : memref<2x2xf32, #tpu.memory_space<vmem>>, vector<2x1xf32>
    %c8 = arith.constant 8 : index
    %c0_7 = arith.constant 0 : index
    %11 = vector.load %arg12[%c8, %c0_7] : memref<32x1xf32, #tpu.memory_space<vmem>>, vector<2x1xf32>
    tpu.vector_store %arg12[%c8, %c0_7], %10 {strides = array<i32>} : memref<32x1xf32, #tpu.memory_space<vmem>>, vector<2x1xf32>,
    %c0_8 = arith.constant 0 : index
    %c1 = arith.constant 1 : index
    %12 = vector.load %arg1[%c0_8, %c1] : memref<2x2xf32, #tpu.memory_space<vmem>>, vector<2x1xf32>
    %c16 = arith.constant 16 : index
    %c0_9 = arith.constant 0 : index
    %13 = vector.load %arg12[%c16, %c0_9] : memref<32x1xf32, #tpu.memory_space<vmem>>, vector<2x1xf32>
    tpu.vector_store %arg12[%c16, %c0_9], %12 {strides = array<i32>} : memref<32x1xf32, #tpu.memory_space<vmem>>, vector<2x1xf32>,
    %c0_10 = arith.constant 0 : index
    %c0_11 = arith.constant 0 : index
    %14 = vector.load %arg2[%c0_10, %c0_11] : memref<2x1xf32, #tpu.memory_space<vmem>>, vector<2x1xf32>
    %c24 = arith.constant 24 : index
    %c0_12 = arith.constant 0 : index
    %15 = vector.load %arg12[%c24, %c0_12] : memref<32x1xf32, #tpu.memory_space<vmem>>, vector<2x1xf32>
    tpu.vector_store %arg12[%c24, %c0_12], %14 {strides = array<i32>} : memref<32x1xf32, #tpu.memory_space<vmem>>, vector<2x1xf32>,
    %c0_13 = arith.constant 0 : index
    %c0_14 = arith.constant 0 : index
    %16 = vector.load %arg12[%c0_13, %c0_14] : memref<32x1xf32, #tpu.memory_space<vmem>>, vector<32x1xf32>
    %17 = tpu.iota {dimensions = array<i32: 1>} : vector<1x128xi32>
    %18 = arith.sitofp %17 : vector<1x128xi32> to vector<1x128xf32>
    %cst_15 = arith.constant -0.0719557852 : f32
    %19 = vector.broadcast %cst_15 : f32 to vector<1x128xf32>
    %20 = arith.mulf %18, %19 : vector<1x128xf32>
    %21 = math.exp %20 : vector<1x128xf32>
    %22 = vector.broadcast %16 : vector<32x1xf32> to vector<32x128xf32>
    %23 = vector.broadcast %21 : vector<1x128xf32> to vector<32x128xf32>
    %24 = arith.mulf %22, %23 : vector<32x128xf32>
    %25 = math.cos %24 : vector<32x128xf32>
    %26 = arith.truncf %25 : vector<32x128xf32> to vector<32x128xbf16>
    %c0_16 = arith.constant 0 : index
    %c0_17 = arith.constant 0 : index
    %27 = vector.load %arg3[%c0_16, %c0_17] : memref<256x640xbf16, #tpu.memory_space<vmem>>, vector<128x640xbf16>
    %cst_18 = arith.constant dense<0.000000e+00> : vector<32x640xf32>
    %28 = tpu.matmul %26, %27, %cst_18 {dimension_numbers = #tpu.dot_dimension_numbers<[1], [0], [0], [1], [0, 0, 1, 1], [], []>} : vector<32x128xbf16>, vector<128x640xbf16>, vector<32x640xf32> -> vector<32x640xf32>
    %29 = math.sin %24 : vector<32x128xf32>
    %30 = arith.truncf %29 : vector<32x128xf32> to vector<32x128xbf16>
    %c128 = arith.constant 128 : index
    %c0_19 = arith.constant 0 : index
    %31 = vector.load %arg3[%c128, %c0_19] : memref<256x640xbf16, #tpu.memory_space<vmem>>, vector<128x640xbf16>
    %cst_20 = arith.constant dense<0.000000e+00> : vector<32x640xf32>
    %32 = tpu.matmul %30, %31, %cst_20 {dimension_numbers = #tpu.dot_dimension_numbers<[1], [0], [0], [1], [0, 0, 1, 1], [], []>} : vector<32x128xbf16>, vector<128x640xbf16>, vector<32x640xf32> -> vector<32x640xf32>
    %33 = arith.addf %28, %32 : vector<32x640xf32>
    %c0_21 = arith.constant 0 : index
    %c0_22 = arith.constant 0 : index
    %34 = vector.load %arg4[%c0_21, %c0_22] : memref<1x640xf32, #tpu.memory_space<vmem>>, vector<1x640xf32>
    %35 = vector.broadcast %34 : vector<1x640xf32> to vector<32x640xf32>
    %36 = arith.addf %33, %35 : vector<32x640xf32>
    %cst_23 = arith.constant 0.000000e+00 : f32
    %37 = vector.broadcast %cst_23 : f32 to vector<32x640xf32>
    %38 = arith.subf %37, %36 : vector<32x640xf32>
    %39 = math.exp %38 : vector<32x640xf32>
    %cst_24 = arith.constant 1.000000e+00 : f32
    %40 = vector.broadcast %cst_24 : f32 to vector<32x640xf32>
    %41 = arith.addf %40, %39 : vector<32x640xf32>
    %42 = tpu.reciprocal %41 : vector<32x640xf32> -> vector<32x640xf32>
    %43 = arith.mulf %36, %42 : vector<32x640xf32>
    %44 = vector.extract_strided_slice %43 {offsets = [0, 0], sizes = [8, 384], strides = [1, 1]} : vector<32x640xf32> to vector<8x384xf32>
    %45 = arith.truncf %44 : vector<8x384xf32> to vector<8x384xbf16>
    %46 = vector.extract_strided_slice %43 {offsets = [8, 384], sizes = [16, 128], strides = [1, 1]} : vector<32x640xf32> to vector<16x128xf32>
    %47 = arith.truncf %46 : vector<16x128xf32> to vector<16x128xbf16>
    %48 = vector.extract_strided_slice %43 {offsets = [24, 512], sizes = [8, 128], strides = [1, 1]} : vector<32x640xf32> to vector<8x128xf32>
    %49 = arith.truncf %48 : vector<8x128xf32> to vector<8x128xbf16>
    %c0_i32_25 = arith.constant 0 : i32
    %50 = tpu.memref_slice %arg16[%c0_i32_25] : memref<3x!tpu.dma_semaphore, #tpu.memory_space<semaphore_mem>> -> memref<1x!tpu.dma_semaphore, #tpu.memory_space<semaphore_mem>>
    %51 = tpu.memref_squeeze %50 : memref<1x!tpu.dma_semaphore, #tpu.memory_space<semaphore_mem>> -> memref<!tpu.dma_semaphore, #tpu.memory_space<semaphore_mem>>
    tpu.wait_dma2 semaphore(%51 : memref<!tpu.dma_semaphore, #tpu.memory_space<semaphore_mem>>) src(%arg5 : memref<384x384xbf16, #tpu.memory_space<any>>) dst(%arg13 : memref<384x384xbf16, #tpu.memory_space<vmem>>)
    %c1_i32_26 = arith.constant 1 : i32
    %52 = tpu.memref_slice %arg16[%c1_i32_26] : memref<3x!tpu.dma_semaphore, #tpu.memory_space<semaphore_mem>> -> memref<1x!tpu.dma_semaphore, #tpu.memory_space<semaphore_mem>>
    %53 = tpu.memref_squeeze %52 : memref<1x!tpu.dma_semaphore, #tpu.memory_space<semaphore_mem>> -> memref<!tpu.dma_semaphore, #tpu.memory_space<semaphore_mem>>
    tpu.wait_dma2 semaphore(%53 : memref<!tpu.dma_semaphore, #tpu.memory_space<semaphore_mem>>) src(%arg7 : memref<128x128xbf16, #tpu.memory_space<any>>) dst(%arg14 : memref<128x128xbf16, #tpu.memory_space<vmem>>)
    %c2_i32_27 = arith.constant 2 : i32
    %54 = tpu.memref_slice %arg16[%c2_i32_27] : memref<3x!tpu.dma_semaphore, #tpu.memory_space<semaphore_mem>> -> memref<1x!tpu.dma_semaphore, #tpu.memory_space<semaphore_mem>>
    %55 = tpu.memref_squeeze %54 : memref<1x!tpu.dma_semaphore, #tpu.memory_space<semaphore_mem>> -> memref<!tpu.dma_semaphore, #tpu.memory_space<semaphore_mem>>
    tpu.wait_dma2 semaphore(%55 : memref<!tpu.dma_semaphore, #tpu.memory_space<semaphore_mem>>) src(%arg9 : memref<128x128xbf16, #tpu.memory_space<any>>) dst(%arg15 : memref<128x128xbf16, #tpu.memory_space<vmem>>)
    %c0_28 = arith.constant 0 : index
    %c0_29 = arith.constant 0 : index
    %56 = vector.load %arg13[%c0_28, %c0_29] : memref<384x384xbf16, #tpu.memory_space<vmem>>, vector<384x384xbf16>
    %cst_30 = arith.constant dense<0.000000e+00> : vector<8x384xf32>
    %57 = tpu.matmul %45, %56, %cst_30 {dimension_numbers = #tpu.dot_dimension_numbers<[1], [0], [0], [1], [0, 0, 1, 1], [], []>} : vector<8x384xbf16>, vector<384x384xbf16>, vector<8x384xf32> -> vector<8x384xf32>
    %c0_31 = arith.constant 0 : index
    %c0_32 = arith.constant 0 : index
    %58 = vector.load %arg6[%c0_31, %c0_32] : memref<1x384xf32, #tpu.memory_space<vmem>>, vector<1x384xf32>
    %59 = vector.broadcast %58 : vector<1x384xf32> to vector<8x384xf32>
    %60 = arith.addf %57, %59 : vector<8x384xf32>
    %c0_33 = arith.constant 0 : index
    %c0_34 = arith.constant 0 : index
    %61 = vector.load %arg14[%c0_33, %c0_34] : memref<128x128xbf16, #tpu.memory_space<vmem>>, vector<128x128xbf16>
    %cst_35 = arith.constant dense<0.000000e+00> : vector<16x128xf32>
    %62 = tpu.matmul %47, %61, %cst_35 {dimension_numbers = #tpu.dot_dimension_numbers<[1], [0], [0], [1], [0, 0, 1, 1], [], []>} : vector<16x128xbf16>, vector<128x128xbf16>, vector<16x128xf32> -> vector<16x128xf32>
    %c0_36 = arith.constant 0 : index
    %c0_37 = arith.constant 0 : index
    %63 = vector.load %arg8[%c0_36, %c0_37] : memref<1x128xf32, #tpu.memory_space<vmem>>, vector<1x128xf32>
    %64 = vector.broadcast %63 : vector<1x128xf32> to vector<16x128xf32>
    %65 = arith.addf %62, %64 : vector<16x128xf32>
    %c0_38 = arith.constant 0 : index
    %c0_39 = arith.constant 0 : index
    %66 = vector.load %arg15[%c0_38, %c0_39] : memref<128x128xbf16, #tpu.memory_space<vmem>>, vector<128x128xbf16>
    %cst_40 = arith.constant dense<0.000000e+00> : vector<8x128xf32>
    %67 = tpu.matmul %49, %66, %cst_40 {dimension_numbers = #tpu.dot_dimension_numbers<[1], [0], [0], [1], [0, 0, 1, 1], [], []>} : vector<8x128xbf16>, vector<128x128xbf16>, vector<8x128xf32> -> vector<8x128xf32>
    %c0_41 = arith.constant 0 : index
    %c0_42 = arith.constant 0 : index
    %68 = vector.load %arg10[%c0_41, %c0_42] : memref<1x128xf32, #tpu.memory_space<vmem>>, vector<1x128xf32>
    %69 = vector.broadcast %68 : vector<1x128xf32> to vector<8x128xf32>
    %70 = arith.addf %67, %69 : vector<8x128xf32>
    %71 = vector.extract_strided_slice %60 {offsets = [0, 0], sizes = [2, 128], strides = [1, 1]} : vector<8x384xf32> to vector<2x128xf32>
    %72 = vector.extract_strided_slice %65 {offsets = [0, 0], sizes = [2, 128], strides = [1, 1]} : vector<16x128xf32> to vector<2x128xf32>
    %73 = arith.addf %71, %72 : vector<2x128xf32>
    %c0_43 = arith.constant 0 : index
    %c0_44 = arith.constant 0 : index
    %74 = vector.load %arg11[%c0_43, %c0_44] : memref<2x384xf32, #tpu.memory_space<vmem>>, vector<2x128xf32>
    tpu.vector_store %arg11[%c0_43, %c0_44], %73 {strides = array<i32>} : memref<2x384xf32, #tpu.memory_space<vmem>>, vector<2x128xf32>,
    %75 = vector.extract_strided_slice %60 {offsets = [0, 128], sizes = [2, 128], strides = [1, 1]} : vector<8x384xf32> to vector<2x128xf32>
    %76 = vector.extract_strided_slice %65 {offsets = [8, 0], sizes = [2, 128], strides = [1, 1]} : vector<16x128xf32> to vector<2x128xf32>
    %77 = arith.addf %75, %76 : vector<2x128xf32>
    %c0_45 = arith.constant 0 : index
    %c128_46 = arith.constant 128 : index
    %78 = vector.load %arg11[%c0_45, %c128_46] : memref<2x384xf32, #tpu.memory_space<vmem>>, vector<2x128xf32>
    tpu.vector_store %arg11[%c0_45, %c128_46], %77 {strides = array<i32>} : memref<2x384xf32, #tpu.memory_space<vmem>>, vector<2x128xf32>,
    %79 = vector.extract_strided_slice %60 {offsets = [0, 256], sizes = [2, 128], strides = [1, 1]} : vector<8x384xf32> to vector<2x128xf32>
    %80 = vector.extract_strided_slice %70 {offsets = [0, 0], sizes = [2, 128], strides = [1, 1]} : vector<8x128xf32> to vector<2x128xf32>
    %81 = arith.addf %79, %80 : vector<2x128xf32>
    %c0_47 = arith.constant 0 : index
    %c256 = arith.constant 256 : index
    %82 = vector.load %arg11[%c0_47, %c256] : memref<2x384xf32, #tpu.memory_space<vmem>>, vector<2x128xf32>
    tpu.vector_store %arg11[%c0_47, %c256], %81 {strides = array<i32>} : memref<2x384xf32, #tpu.memory_space<vmem>>, vector<2x128xf32>,
    return
  }
}

</mosaic_0001>

<llo_original>
// kernel: pixart_combined_timestep_size_embeddings.1
$region0: #{pixart_combined_timestep_size_embeddings.1}
  #allocation0 [shape = 'u32[]', space=smem, size = 0x4, offset = 0x4, fixed_abs, tag = 'smem constant byte address 0x4 - core index']
  #allocation1 [shape = 'u32[144,128]{1,0:T(1,128)}', space=vmem, size = 0x12000, scoped, tag = 'internal scratch']
  #allocation2 [shape = 'f32[32,1]{1,0:T(8,128)}', space=vmem, size = 0x4000, scoped, tag = 'scratch operand']
  #allocation3 [shape = 'bf16[384,384]{1,0:T(8,128)(2,1)}', space=vmem, size = 0x48000, scoped, tag = 'scratch operand']
  #allocation4 [shape = 'bf16[128,128]{1,0:T(8,128)(2,1)}', space=vmem, size = 0x8000, scoped, tag = 'scratch operand']
  #allocation5 [shape = 'bf16[128,128]{1,0:T(8,128)(2,1)}', space=vmem, size = 0x8000, scoped, tag = 'scratch operand']
  #allocation6 [shape = 's32[3]{0}', space=sflag, size = 0xc, scoped, tag = 'scratch operand']
  #allocation13 [shape = 's32[]', space=sflag, size = 0x4, offset = 0, fixed_abs, tag = 'sflag constant byte address 0x0 - dummy sync flag']
  #allocation14 [shape = 's32[]', space=sflag, size = 0x4, offset = 0, fixed_abs, tag = 'sflag constant byte address 0x0 - dummy sync flag']
  #allocation15 [shape = 'u32[]', space=smem, size = 0x4, offset = 0x44, fixed_abs, tag = 'smem constant byte address 0x44 - assertion arg 0']
  #allocation16 [shape = 'u32[]', space=smem, size = 0x4, offset = 0x48, fixed_abs, tag = 'smem constant byte address 0x48 - assertion arg 1']
  #allocation17 [shape = 's32[]', space=sflag, size = 0x4, offset = 0, fixed_abs, tag = 'sflag constant byte address 0x0 - dummy sync flag']
  #allocation18 [shape = 's32[]', space=sflag, size = 0x4, offset = 0, fixed_abs, tag = 'sflag constant byte address 0x0 - dummy sync flag']
  #allocation19 [shape = 's32[]', space=sflag, size = 0x4, offset = 0, fixed_abs, tag = 'sflag constant byte address 0x0 - dummy sync flag']
  #allocation20 [shape = 's32[]', space=sflag, size = 0x4, offset = 0, fixed_abs, tag = 'sflag constant byte address 0x0 - dummy sync flag']
  %s0 = inlined_call_operand.vmem [shape: f32[2,1], index: 0, kind: input, shape index: {}]
  %s1 = inlined_call_operand.hbm [shape: f32[2,2], index: 1, kind: input, shape index: {}]
  %s2 = inlined_call_operand.vmem [shape: f32[2,1], index: 2, kind: input, shape index: {}]
  %s3 = inlined_call_operand.hbm [shape: bf16[256,640], index: 3, kind: input, shape index: {}]
  %s4 = inlined_call_operand.vmem [shape: f32[1,640], index: 4, kind: input, shape index: {}]
  %s5 = inlined_call_operand.hbm [shape: bf16[384,384], index: 5, kind: input, shape index: {}]
  %s6 = inlined_call_operand.vmem [shape: f32[1,384], index: 6, kind: input, shape index: {}]
  %s7 = inlined_call_operand.hbm [shape: bf16[128,128], index: 7, kind: input, shape index: {}]
  %s8 = inlined_call_operand.vmem [shape: f32[1,128], index: 8, kind: input, shape index: {}]
  %s9 = inlined_call_operand.hbm [shape: bf16[128,128], index: 9, kind: input, shape index: {}]
  %s10 = inlined_call_operand.vmem [shape: f32[1,128], index: 10, kind: input, shape index: {}]
  %s11 = inlined_call_operand.hbm [shape: f32[2,384], index: 11, kind: output, shape index: {}]
  %s12 = sld [smem:[#allocation0]]
  $region62: #{pixart_combined_timestep_size_embeddings.1} parent=0
    _
  %s14 = ssub.s32 1, %s12
  %s15 = scalar_select 0, %s14, %s12
  $region1: #{pixart_combined_timestep_size_embeddings.1} parent=0
    #allocation7 [shape = 'u8[1024]{0}', space=vmem, size = 0x400, scoped, tag = 'input window, operand 1, single buffered']
    #allocation8 [shape = 's32[1]{0}', space=sflag, size = 0x4, scoped, tag = 'scoped memory for pixart_combined_timestep_size_embeddings.1']
    #allocation9 [shape = 's32[1]{0}', space=sflag, size = 0x4, scoped, tag = 'scoped memory for pixart_combined_timestep_size_embeddings.1']
    #allocation10 [shape = 'u8[327680]{0}', space=vmem, size = 0x50000, scoped, tag = 'input window, operand 3, single buffered']
    #allocation11 [shape = 's32[1]{0}', space=sflag, size = 0x4, scoped, tag = 'scoped memory for pixart_combined_timestep_size_embeddings.1']
    #allocation12 [shape = 'u8[3072]{0}', space=vmem, size = 0xc00, scoped, tag = 'output window, operand 0, single buffered']
    %16 = vsyncpa [#allocation8], 0
    %17 = vsyncpa [#allocation11], 0
    %18 = vsyncpa [#allocation9], 0
    // Predicated region
    $region2: #{pixart_combined_timestep_size_embeddings.1} parent=1 // pred_check
      _
    $region3: #{pixart_combined_timestep_size_embeddings.1} parent=1 // pred_check_branch
      %20 = sbr.rel (0) target = $region5
    $region4: #{pixart_combined_timestep_size_embeddings.1} parent=1 // pred_region
      _
    $region5: #{pixart_combined_timestep_size_embeddings.1} parent=1 // pred_fallthru
      _
    // Predicated region
    $region6: #{pixart_combined_timestep_size_embeddings.1} parent=1 // pred_check
      _
    $region7: #{pixart_combined_timestep_size_embeddings.1} parent=1 // pred_check_branch
      %22 = sbr.rel (0) target = $region9
    $region8: #{pixart_combined_timestep_size_embeddings.1} parent=1 // pred_region
      %s24 = ssub.s32 32, 32
      %25 = vsyncadd [#allocation8], %s24
      %s27 = sshll.u32 [#allocation7], 4
      %s28 = int_to_ptr.vmem [resolvable:$true] %s27
      %30 = dma.hbm_to_vmem [thread:$0]  %s1, 32, %s28, [#allocation8]
    $region9: #{pixart_combined_timestep_size_embeddings.1} parent=1 // pred_fallthru
      _
    // Predicated region
    $region10: #{pixart_combined_timestep_size_embeddings.1} parent=1 // pred_check
      _
    $region11: #{pixart_combined_timestep_size_embeddings.1} parent=1 // pred_check_branch
      %32 = sbr.rel (0) target = $region13
    $region12: #{pixart_combined_timestep_size_embeddings.1} parent=1 // pred_region
      _
    $region13: #{pixart_combined_timestep_size_embeddings.1} parent=1 // pred_fallthru
      _
    // Predicated region
    $region14: #{pixart_combined_timestep_size_embeddings.1} parent=1 // pred_check
      _
    $region15: #{pixart_combined_timestep_size_embeddings.1} parent=1 // pred_check_branch
      %34 = sbr.rel (0) target = $region17
    $region16: #{pixart_combined_timestep_size_embeddings.1} parent=1 // pred_region
      %s36 = ssub.s32 10240, 10240
      %37 = vsyncadd [#allocation11], %s36
      %s38 = sshll.u32 [#allocation10], 4
      %s39 = int_to_ptr.vmem [resolvable:$true] %s38
      %44 = dma.hbm_to_vmem [thread:$0]  %s3, 10240, %s39, [#allocation11], 320, 320, 20
    $region17: #{pixart_combined_timestep_size_embeddings.1} parent=1 // pred_fallthru
      _
    // Predicated region
    $region18: #{pixart_combined_timestep_size_embeddings.1} parent=1 // pred_check
      _
    $region19: #{pixart_combined_timestep_size_embeddings.1} parent=1 // pred_check_branch
      %46 = sbr.rel (0) target = $region21
    $region20: #{pixart_combined_timestep_size_embeddings.1} parent=1 // pred_region
      _
    $region21: #{pixart_combined_timestep_size_embeddings.1} parent=1 // pred_fallthru
      _
    // Predicated region
    $region22: #{pixart_combined_timestep_size_embeddings.1} parent=1 // pred_check
      _
    $region23: #{pixart_combined_timestep_size_embeddings.1} parent=1 // pred_check_branch
      %48 = sbr.rel (0) target = $region25
    $region24: #{pixart_combined_timestep_size_embeddings.1} parent=1 // pred_region
      _
    $region25: #{pixart_combined_timestep_size_embeddings.1} parent=1 // pred_fallthru
      _
    // Predicated region
    $region26: #{pixart_combined_timestep_size_embeddings.1} parent=1 // pred_check
      _
    $region27: #{pixart_combined_timestep_size_embeddings.1} parent=1 // pred_check_branch
      %50 = sbr.rel (0) target = $region29
    $region28: #{pixart_combined_timestep_size_embeddings.1} parent=1 // pred_region
      _
    $region29: #{pixart_combined_timestep_size_embeddings.1} parent=1 // pred_fallthru
      _
    // Predicated region
    $region30: #{pixart_combined_timestep_size_embeddings.1} parent=1 // pred_check
      _
    $region31: #{pixart_combined_timestep_size_embeddings.1} parent=1 // pred_check_branch
      %52 = sbr.rel (0) target = $region33
    $region32: #{pixart_combined_timestep_size_embeddings.1} parent=1 // pred_region
      _
    $region33: #{pixart_combined_timestep_size_embeddings.1} parent=1 // pred_fallthru
      _
    // Predicated region
    $region34: #{pixart_combined_timestep_size_embeddings.1} parent=1 // pred_check
      _
    $region35: #{pixart_combined_timestep_size_embeddings.1} parent=1 // pred_check_branch
      %54 = sbr.rel (0) target = $region37
    $region36: #{pixart_combined_timestep_size_embeddings.1} parent=1 // pred_region
      %55 = dma.done [#allocation8], 32
    $region37: #{pixart_combined_timestep_size_embeddings.1} parent=1 // pred_fallthru
      _
    // Predicated region
    $region38: #{pixart_combined_timestep_size_embeddings.1} parent=1 // pred_check
      _
    $region39: #{pixart_combined_timestep_size_embeddings.1} parent=1 // pred_check_branch
      %57 = sbr.rel (0) target = $region41
    $region40: #{pixart_combined_timestep_size_embeddings.1} parent=1 // pred_region
      %58 = dma.done [#allocation11], 10240
    $region41: #{pixart_combined_timestep_size_embeddings.1} parent=1 // pred_fallthru
      _
    // Predicated region
    $region42: #{pixart_combined_timestep_size_embeddings.1} parent=1 // pred_check
      _
    $region43: #{pixart_combined_timestep_size_embeddings.1} parent=1 // pred_check_branch
      %61 = sbr.rel target = $region45
    $region44: #{pixart_combined_timestep_size_embeddings.1} parent=1 // pred_region
      %62 = sst [smem:[#allocation15]] [#allocation14]
      %63 = sst [smem:[#allocation16]] [#allocation13]
    $region45: #{pixart_combined_timestep_size_embeddings.1} parent=1 // pred_fallthru
      _
    %65 = shalt.err (0)
    %s67 = sshll.u32 [#allocation3], 4
    %s68 = int_to_ptr.vmem [resolvable:$true] %s67
    %70 = dma.hbm_to_vmem [thread:$0]  %s5, 9216, %s68, [#allocation6]
    %s71 = scalar_lea.sflag [#allocation6], 1
    // Predicated region
    $region46: #{pixart_combined_timestep_size_embeddings.1} parent=1 // pred_check
      _
    $region47: #{pixart_combined_timestep_size_embeddings.1} parent=1 // pred_check_branch
      %73 = sbr.rel target = $region49
    $region48: #{pixart_combined_timestep_size_embeddings.1} parent=1 // pred_region
      %74 = sst [smem:[#allocation15]] [#allocation18]
      %75 = sst [smem:[#allocation16]] [#allocation17]
    $region49: #{pixart_combined_timestep_size_embeddings.1} parent=1 // pred_fallthru
      _
    %77 = shalt.err (0)
    %s79 = sshll.u32 [#allocation4], 4
    %s80 = int_to_ptr.vmem [resolvable:$true] %s79
    %82 = dma.hbm_to_vmem [thread:$0]  %s7, 1024, %s80, %s71
    %s83 = scalar_lea.sflag [#allocation6], 2
    // Predicated region
    $region50: #{pixart_combined_timestep_size_embeddings.1} parent=1 // pred_check
      _
    $region51: #{pixart_combined_timestep_size_embeddings.1} parent=1 // pred_check_branch
      %85 = sbr.rel target = $region53
    $region52: #{pixart_combined_timestep_size_embeddings.1} parent=1 // pred_region
      %86 = sst [smem:[#allocation15]] [#allocation20]
      %87 = sst [smem:[#allocation16]] [#allocation19]
    $region53: #{pixart_combined_timestep_size_embeddings.1} parent=1 // pred_fallthru
      _
    %89 = shalt.err (0)
    %s91 = sshll.u32 [#allocation5], 4
    %s92 = int_to_ptr.vmem [resolvable:$true] %s91
    %94 = dma.hbm_to_vmem [thread:$0]  %s9, 1024, %s92, %s83
    %vm95 = vcmask 7168
    %96 = vst.msk [vmem:[#allocation2] sm:$0xff] %vm95, 0.0
    %97 = vst.msk [vmem:[#allocation2 + $0x8] sm:$0xff] %vm95, 0.0
    %98 = vst.msk [vmem:[#allocation2 + $0x10] sm:$0xff] %vm95, 0.0
    %99 = vst.msk [vmem:[#allocation2 + $0x18] sm:$0xff] %vm95, 0.0
    %v100 = vld [vmem:[%s0] sm:$0x3]
    %vm101 = vcmask 1024
    %102 = vst.msk [vmem:[#allocation2] sm:$0x3] %vm101, %v100
    %v103 = vld [vmem:[#allocation7] sm:$0x3]
    %104 = vst.msk [vmem:[#allocation2 + $0x8] sm:$0x3] %vm101, %v103
    %v105 = vld [vmem:[#allocation7] sm:$0x3]
    %107 = vrot.lane.b32.xlu0 %v105, 127
    %v108 = vpop.permute.xlu0 %107
    %110 = vst.msk [vmem:[#allocation2 + $0x10] sm:$0x3] %vm101, %v108
    %v111 = vld [vmem:[%s2] sm:$0x3]
    %112 = vst.msk [vmem:[#allocation2 + $0x18] sm:$0x3] %vm101, %v111
    %v113 = vld [vmem:[#allocation2] sm:$0xff]
    %v114 = vld [vmem:[#allocation2 + $0x8] sm:$0xff]
    %v115 = vld [vmem:[#allocation2 + $0x10] sm:$0xff]
    %v116 = vld [vmem:[#allocation2 + $0x18] sm:$0xff]
    %v117 = vlaneseq
    %v118 = vand.u32 %v117, 127
    %v119 = vcvt.s32.f32 %v118
    %v120 = vmul.f32 %v119, -0.071955785
    %v121 = vmul.f32 %v120, 1.442695
    %v122 = vpow.pop %v121
    %124 = vset.pattern.permute.xlu0 0
    %125 = vperm.xlu0 %124, %v113
    %v126 = vpop.permute.xlu0 %125
    %129 = vset.pattern.permute.xlu0 0
    %130 = vperm.xlu0 %129, %v114
    %v131 = vpop.permute.xlu0 %130
    %134 = vset.pattern.permute.xlu0 0
    %135 = vperm.xlu0 %134, %v115
    %v136 = vpop.permute.xlu0 %135
    %139 = vset.pattern.permute.xlu0 0
    %140 = vperm.xlu0 %139, %v116
    %v141 = vpop.permute.xlu0 %140
    %v143 = vmul.f32 %v126, %v122
    %v144 = vmul.f32 %v131, %v122
    %v145 = vmul.f32 %v136, %v122
    %v146 = vmul.f32 %v141, %v122
    %v147 = vand.u32 2147483647, %v143
    %vm148 = vcmp.le.f32.partialorder %v147, 0.7853982
    %vm149 = vcmp.lt.s32.totalorder %v143, 0
    %v150 = vand.u32 %v143, 2139095040
    %v151 = vshrl.u32 %v150, 23
    %v152 = vsub.s32 %v151, 127
    %v153 = vand.u32 2147483647, %v143
    %v154 = vand.u32 %v153, 8388607
    %v155 = vor.u32 %v154, 8388608
    %v156 = vsub.s32 0, %v155
    %v157 = vadd.s32 %v152, 1
    %vm158 = vcmp.gt.s32.totalorder %v157, 0
    %v159 = vsel %vm158, %v157, 0
    %v160 = vshrl.u32 %v159, 5
    %v161 = vand.u32 %v159, 31
    %v162 = vsub.s32 32, %v161
    %v163 = vshrl.u32 683565275, %v162
    %v164 = vshll.u32 683565275, %v161
    %v165 = vshrl.u32 2475754826, %v162
    %v166 = vor.u32 %v164, %v165
    %v167 = vshll.u32 2475754826, %v161
    %v168 = vshrl.u32 2131351028, %v162
    %v169 = vor.u32 %v167, %v168
    %v170 = vshll.u32 2131351028, %v161
    %v171 = vshrl.u32 2102212464, %v162
    %v172 = vor.u32 %v170, %v171
    %v173 = vshll.u32 2102212464, %v161
    %v174 = vshrl.u32 920167782, %v162
    %v175 = vor.u32 %v173, %v174
    %v176 = vshll.u32 920167782, %v161
    %v177 = vshrl.u32 1326507024, %v162
    %v178 = vor.u32 %v176, %v177
    %vm179 = vcmp.lt.s32.totalorder %v160, 1
    %vm180 = vcmp.lt.s32.totalorder %v160, 2
    %vm181 = vcmp.lt.s32.totalorder %v160, 3
    %vm182 = vcmp.lt.s32.totalorder %v160, 4
    %v183 = vsel %vm179, %v163, %v166
    %v184 = vsel %vm182, %v172, 2102212464
    %v185 = vsel %vm181, %v169, %v184
    %v186 = vsel %vm180, %v183, %v185
    %v187 = vsel %vm179, %v166, %v169
    %v188 = vsel %vm182, %v175, 920167782
    %v189 = vsel %vm181, %v172, %v188
    %v190 = vsel %vm180, %v187, %v189
    %v191 = vsel %vm179, %v169, %v172
    %v192 = vsel %vm182, %v178, 1326507024
    %v193 = vsel %vm181, %v175, %v192
    %v194 = vsel %vm180, %v191, %v193
    %v195 = vshll.u32 %v155, 8
    %v196 = vmul.u32.u64.compose %v195, %v194
    %v197 = vextract.low.u32 %v196
    %v198 = vextract.high.u32 %v196
    %v199 = vmul.u32.u64.compose %v195, %v190
    %v200 = vextract.low.u32 %v199
    %v201 = vextract.high.u32 %v199
    %v202 = vmul.u32 %v195, %v186
    %v203 = vadd.s32 %v198, %v200
    %vm204 = vc.u32 %v198, %v200
    %v205 = vadd.s32 %v201, 1
    %v206 = vsel %vm204, %v205, %v201
    %v207 = vadd.s32 %v202, %v206
    %v208 = vadd.s32 %v207, 536870912
    %v209 = vshrl.u32 %v208, 30
    %v210 = vshll.u32 %v209, 30
    %v211 = vsub.s32 %v207, %v210
    %vm212 = vcmp.lt.s32.totalorder %v211, 0
    %v213 = vsub.s32 0, %v211
    %v214 = vsel %vm212, %v213, %v211
    %v215 = vclz %v214
    %v216 = vsub.s32 %v215, 2
    %vm217 = vcmp.gt.s32.totalorder 0, %v216
    %v218 = vsel %vm217, 0, %v216
    %v219 = vsub.s32 32, %v218
    %v220 = vshll.u32 %v211, %v218
    %v221 = vshrl.u32 %v203, %v219
    %v222 = vor.u32 %v220, %v221
    %v223 = vsub.s32 4294967266, %v218
    %v224 = vadd.s32 %v223, 127
    %v225 = vshll.u32 %v224, 23
    %v226 = vor.u32 4788187, %v225
    %v227 = vand.u32 2147483647, %v226
    %v229 = vcvt.s32.f32 %v222
    %v230 = vmul.f32 %v229, %v227
    %v231 = vxor.u32 %v230, 2147483648
    %v232 = vsel %vm149, %v231, %v230
    %v233 = vsub.s32 4, %v209
    %v234 = vsel %vm149, %v233, %v209
    %v235 = vsel %vm148, %v143, %v232
    %v236 = vsel %vm148, 0, %v234
    %v237 = vcosq.f32.pop %v235
    %v238 = vsinq.f32.pop %v235
    %vm239 = vweird.f32 %v143
    %v240 = vand.u32 %v236, 3
    %vm241 = vcmp.lt.s32.totalorder %v240, 2
    %vm242 = vcmp.eq.s32.totalorder %v240, 0
    %v243 = vxor.u32 %v238, 2147483648
    %v244 = vsel %vm242, %v237, %v243
    %vm245 = vcmp.eq.s32.totalorder %v240, 2
    %v246 = vxor.u32 %v237, 2147483648
    %v247 = vsel %vm245, %v246, %v238
    %v248 = vsel %vm241, %v244, %v247
    %v249 = vsel %vm239, nan, %v248
    %v250 = vand.u32 2147483647, %v144
    %vm251 = vcmp.le.f32.partialorder %v250, 0.7853982
    %vm252 = vcmp.lt.s32.totalorder %v144, 0
    %v253 = vand.u32 %v144, 2139095040
    %v254 = vshrl.u32 %v253, 23
    %v255 = vsub.s32 %v254, 127
    %v256 = vand.u32 2147483647, %v144
    %v257 = vand.u32 %v256, 8388607
    %v258 = vor.u32 %v257, 8388608
    %v259 = vsub.s32 0, %v258
    %v260 = vadd.s32 %v255, 1
    %vm261 = vcmp.gt.s32.totalorder %v260, 0
    %v262 = vsel %vm261, %v260, 0
    %v263 = vshrl.u32 %v262, 5
    %v264 = vand.u32 %v262, 31
    %v265 = vsub.s32 32, %v264
    %v266 = vshrl.u32 683565275, %v265
    %v267 = vshll.u32 683565275, %v264
    %v268 = vshrl.u32 2475754826, %v265
    %v269 = vor.u32 %v267, %v268
    %v270 = vshll.u32 2475754826, %v264
    %v271 = vshrl.u32 2131351028, %v265
    %v272 = vor.u32 %v270, %v271
    %v273 = vshll.u32 2131351028, %v264
    %v274 = vshrl.u32 2102212464, %v265
    %v275 = vor.u32 %v273, %v274
    %v276 = vshll.u32 2102212464, %v264
    %v277 = vshrl.u32 920167782, %v265
    %v278 = vor.u32 %v276, %v277
    %v279 = vshll.u32 920167782, %v264
    %v280 = vshrl.u32 1326507024, %v265
    %v281 = vor.u32 %v279, %v280
    %vm282 = vcmp.lt.s32.totalorder %v263, 1
    %vm283 = vcmp.lt.s32.totalorder %v263, 2
    %vm284 = vcmp.lt.s32.totalorder %v263, 3
    %vm285 = vcmp.lt.s32.totalorder %v263, 4
    %v286 = vsel %vm282, %v266, %v269
    %v287 = vsel %vm285, %v275, 2102212464
    %v288 = vsel %vm284, %v272, %v287
    %v289 = vsel %vm283, %v286, %v288
    %v290 = vsel %vm282, %v269, %v272
    %v291 = vsel %vm285, %v278, 920167782
    %v292 = vsel %vm284, %v275, %v291
    %v293 = vsel %vm283, %v290, %v292
    %v294 = vsel %vm282, %v272, %v275
    %v295 = vsel %vm285, %v281, 1326507024
    %v296 = vsel %vm284, %v278, %v295
    %v297 = vsel %vm283, %v294, %v296
    %v298 = vshll.u32 %v258, 8
    %v299 = vmul.u32.u64.compose %v298, %v297
    %v300 = vextract.low.u32 %v299
    %v301 = vextract.high.u32 %v299
    %v302 = vmul.u32.u64.compose %v298, %v293
    %v303 = vextract.low.u32 %v302
    %v304 = vextract.high.u32 %v302
    %v305 = vmul.u32 %v298, %v289
    %v306 = vadd.s32 %v301, %v303
    %vm307 = vc.u32 %v301, %v303
    %v308 = vadd.s32 %v304, 1
    %v309 = vsel %vm307, %v308, %v304
    %v310 = vadd.s32 %v305, %v309
    %v311 = vadd.s32 %v310, 536870912
    %v312 = vshrl.u32 %v311, 30
    %v313 = vshll.u32 %v312, 30
    %v314 = vsub.s32 %v310, %v313
    %vm315 = vcmp.lt.s32.totalorder %v314, 0
    %v316 = vsub.s32 0, %v314
    %v317 = vsel %vm315, %v316, %v314
    %v318 = vclz %v317
    %v319 = vsub.s32 %v318, 2
    %vm320 = vcmp.gt.s32.totalorder 0, %v319
    %v321 = vsel %vm320, 0, %v319
    %v322 = vsub.s32 32, %v321
    %v323 = vshll.u32 %v314, %v321
    %v324 = vshrl.u32 %v306, %v322
    %v325 = vor.u32 %v323, %v324
    %v326 = vsub.s32 4294967266, %v321
    %v327 = vadd.s32 %v326, 127
    %v328 = vshll.u32 %v327, 23
    %v329 = vor.u32 4788187, %v328
    %v330 = vand.u32 2147483647, %v329
    %v332 = vcvt.s32.f32 %v325
    %v333 = vmul.f32 %v332, %v330
    %v334 = vxor.u32 %v333, 2147483648
    %v335 = vsel %vm252, %v334, %v333
    %v336 = vsub.s32 4, %v312
    %v337 = vsel %vm252, %v336, %v312
    %v338 = vsel %vm251, %v144, %v335
    %v339 = vsel %vm251, 0, %v337
    %v340 = vcosq.f32.pop %v338
    %v341 = vsinq.f32.pop %v338
    %vm342 = vweird.f32 %v144
    %v343 = vand.u32 %v339, 3
    %vm344 = vcmp.lt.s32.totalorder %v343, 2
    %vm345 = vcmp.eq.s32.totalorder %v343, 0
    %v346 = vxor.u32 %v341, 2147483648
    %v347 = vsel %vm345, %v340, %v346
    %vm348 = vcmp.eq.s32.totalorder %v343, 2
    %v349 = vxor.u32 %v340, 2147483648
    %v350 = vsel %vm348, %v349, %v341
    %v351 = vsel %vm344, %v347, %v350
    %v352 = vsel %vm342, nan, %v351
    %v353 = vand.u32 2147483647, %v145
    %vm354 = vcmp.le.f32.partialorder %v353, 0.7853982
    %vm355 = vcmp.lt.s32.totalorder %v145, 0
    %v356 = vand.u32 %v145, 2139095040
    %v357 = vshrl.u32 %v356, 23
    %v358 = vsub.s32 %v357, 127
    %v359 = vand.u32 2147483647, %v145
    %v360 = vand.u32 %v359, 8388607
    %v361 = vor.u32 %v360, 8388608
    %v362 = vsub.s32 0, %v361
    %v363 = vadd.s32 %v358, 1
    %vm364 = vcmp.gt.s32.totalorder %v363, 0
    %v365 = vsel %vm364, %v363, 0
    %v366 = vshrl.u32 %v365, 5
    %v367 = vand.u32 %v365, 31
    %v368 = vsub.s32 32, %v367
    %v369 = vshrl.u32 683565275, %v368
    %v370 = vshll.u32 683565275, %v367
    %v371 = vshrl.u32 2475754826, %v368
    %v372 = vor.u32 %v370, %v371
    %v373 = vshll.u32 2475754826, %v367
    %v374 = vshrl.u32 2131351028, %v368
    %v375 = vor.u32 %v373, %v374
    %v376 = vshll.u32 2131351028, %v367
    %v377 = vshrl.u32 2102212464, %v368
    %v378 = vor.u32 %v376, %v377
    %v379 = vshll.u32 2102212464, %v367
    %v380 = vshrl.u32 920167782, %v368
    %v381 = vor.u32 %v379, %v380
    %v382 = vshll.u32 920167782, %v367
    %v383 = vshrl.u32 1326507024, %v368
    %v384 = vor.u32 %v382, %v383
    %vm385 = vcmp.lt.s32.totalorder %v366, 1
    %vm386 = vcmp.lt.s32.totalorder %v366, 2
    %vm387 = vcmp.lt.s32.totalorder %v366, 3
    %vm388 = vcmp.lt.s32.totalorder %v366, 4
    %v389 = vsel %vm385, %v369, %v372
    %v390 = vsel %vm388, %v378, 2102212464
    %v391 = vsel %vm387, %v375, %v390
    %v392 = vsel %vm386, %v389, %v391
    %v393 = vsel %vm385, %v372, %v375
    %v394 = vsel %vm388, %v381, 920167782
    %v395 = vsel %vm387, %v378, %v394
    %v396 = vsel %vm386, %v393, %v395
    %v397 = vsel %vm385, %v375, %v378
    %v398 = vsel %vm388, %v384, 1326507024
    %v399 = vsel %vm387, %v381, %v398
    %v400 = vsel %vm386, %v397, %v399
    %v401 = vshll.u32 %v361, 8
    %v402 = vmul.u32.u64.compose %v401, %v400
    %v403 = vextract.low.u32 %v402
    %v404 = vextract.high.u32 %v402
    %v405 = vmul.u32.u64.compose %v401, %v396
    %v406 = vextract.low.u32 %v405
    %v407 = vextract.high.u32 %v405
    %v408 = vmul.u32 %v401, %v392
    %v409 = vadd.s32 %v404, %v406
    %vm410 = vc.u32 %v404, %v406
    %v411 = vadd.s32 %v407, 1
    %v412 = vsel %vm410, %v411, %v407
    %v413 = vadd.s32 %v408, %v412
    %v414 = vadd.s32 %v413, 536870912
    %v415 = vshrl.u32 %v414, 30
    %v416 = vshll.u32 %v415, 30
    %v417 = vsub.s32 %v413, %v416
    %vm418 = vcmp.lt.s32.totalorder %v417, 0
    %v419 = vsub.s32 0, %v417
    %v420 = vsel %vm418, %v419, %v417
    %v421 = vclz %v420
    %v422 = vsub.s32 %v421, 2
    %vm423 = vcmp.gt.s32.totalorder 0, %v422
    %v424 = vsel %vm423, 0, %v422
    %v425 = vsub.s32 32, %v424
    %v426 = vshll.u32 %v417, %v424
    %v427 = vshrl.u32 %v409, %v425
    %v428 = vor.u32 %v426, %v427
    %v429 = vsub.s32 4294967266, %v424
    %v430 = vadd.s32 %v429, 127
    %v431 = vshll.u32 %v430, 23
    %v432 = vor.u32 4788187, %v431
    %v433 = vand.u32 2147483647, %v432
    %v435 = vcvt.s32.f32 %v428
    %v436 = vmul.f32 %v435, %v433
    %v437 = vxor.u32 %v436, 2147483648
    %v438 = vsel %vm355, %v437, %v436
    %v439 = vsub.s32 4, %v415
    %v440 = vsel %vm355, %v439, %v415
    %v441 = vsel %vm354, %v145, %v438
    %v442 = vsel %vm354, 0, %v440
    %v443 = vcosq.f32.pop %v441
    %v444 = vsinq.f32.pop %v441
    %vm445 = vweird.f32 %v145
    %v446 = vand.u32 %v442, 3
    %vm447 = vcmp.lt.s32.totalorder %v446, 2
    %vm448 = vcmp.eq.s32.totalorder %v446, 0
    %v449 = vxor.u32 %v444, 2147483648
    %v450 = vsel %vm448, %v443, %v449
    %vm451 = vcmp.eq.s32.totalorder %v446, 2
    %v452 = vxor.u32 %v443, 2147483648
    %v453 = vsel %vm451, %v452, %v444
    %v454 = vsel %vm447, %v450, %v453
    %v455 = vsel %vm445, nan, %v454
    %v456 = vand.u32 2147483647, %v146
    %vm457 = vcmp.le.f32.partialorder %v456, 0.7853982
    %vm458 = vcmp.lt.s32.totalorder %v146, 0
    %v459 = vand.u32 %v146, 2139095040
    %v460 = vshrl.u32 %v459, 23
    %v461 = vsub.s32 %v460, 127
    %v462 = vand.u32 2147483647, %v146
    %v463 = vand.u32 %v462, 8388607
    %v464 = vor.u32 %v463, 8388608
    %v465 = vsub.s32 0, %v464
    %v466 = vadd.s32 %v461, 1
    %vm467 = vcmp.gt.s32.totalorder %v466, 0
    %v468 = vsel %vm467, %v466, 0
    %v469 = vshrl.u32 %v468, 5
    %v470 = vand.u32 %v468, 31
    %v471 = vsub.s32 32, %v470
    %v472 = vshrl.u32 683565275, %v471
    %v473 = vshll.u32 683565275, %v470
    %v474 = vshrl.u32 2475754826, %v471
    %v475 = vor.u32 %v473, %v474
    %v476 = vshll.u32 2475754826, %v470
    %v477 = vshrl.u32 2131351028, %v471
    %v478 = vor.u32 %v476, %v477
    %v479 = vshll.u32 2131351028, %v470
    %v480 = vshrl.u32 2102212464, %v471
    %v481 = vor.u32 %v479, %v480
    %v482 = vshll.u32 2102212464, %v470
    %v483 = vshrl.u32 920167782, %v471
    %v484 = vor.u32 %v482, %v483
    %v485 = vshll.u32 920167782, %v470
    %v486 = vshrl.u32 1326507024, %v471
    %v487 = vor.u32 %v485, %v486
    %vm488 = vcmp.lt.s32.totalorder %v469, 1
    %vm489 = vcmp.lt.s32.totalorder %v469, 2
    %vm490 = vcmp.lt.s32.totalorder %v469, 3
    %vm491 = vcmp.lt.s32.totalorder %v469, 4
    %v492 = vsel %vm488, %v472, %v475
    %v493 = vsel %vm491, %v481, 2102212464
    %v494 = vsel %vm490, %v478, %v493
    %v495 = vsel %vm489, %v492, %v494
    %v496 = vsel %vm488, %v475, %v478
    %v497 = vsel %vm491, %v484, 920167782
    %v498 = vsel %vm490, %v481, %v497
    %v499 = vsel %vm489, %v496, %v498
    %v500 = vsel %vm488, %v478, %v481
    %v501 = vsel %vm491, %v487, 1326507024
    %v502 = vsel %vm490, %v484, %v501
    %v503 = vsel %vm489, %v500, %v502
    %v504 = vshll.u32 %v464, 8
    %v505 = vmul.u32.u64.compose %v504, %v503
    %v506 = vextract.low.u32 %v505
    %v507 = vextract.high.u32 %v505
    %v508 = vmul.u32.u64.compose %v504, %v499
    %v509 = vextract.low.u32 %v508
    %v510 = vextract.high.u32 %v508
    %v511 = vmul.u32 %v504, %v495
    %v512 = vadd.s32 %v507, %v509
    %vm513 = vc.u32 %v507, %v509
    %v514 = vadd.s32 %v510, 1
    %v515 = vsel %vm513, %v514, %v510
    %v516 = vadd.s32 %v511, %v515
    %v517 = vadd.s32 %v516, 536870912
    %v518 = vshrl.u32 %v517, 30
    %v519 = vshll.u32 %v518, 30
    %v520 = vsub.s32 %v516, %v519
    %vm521 = vcmp.lt.s32.totalorder %v520, 0
    %v522 = vsub.s32 0, %v520
    %v523 = vsel %vm521, %v522, %v520
    %v524 = vclz %v523
    %v525 = vsub.s32 %v524, 2
    %vm526 = vcmp.gt.s32.totalorder 0, %v525
    %v527 = vsel %vm526, 0, %v525
    %v528 = vsub.s32 32, %v527
    %v529 = vshll.u32 %v520, %v527
    %v530 = vshrl.u32 %v512, %v528
    %v531 = vor.u32 %v529, %v530
    %v532 = vsub.s32 4294967266, %v527
    %v533 = vadd.s32 %v532, 127
    %v534 = vshll.u32 %v533, 23
    %v535 = vor.u32 4788187, %v534
    %v536 = vand.u32 2147483647, %v535
    %v538 = vcvt.s32.f32 %v531
    %v539 = vmul.f32 %v538, %v536
    %v540 = vxor.u32 %v539, 2147483648
    %v541 = vsel %vm458, %v540, %v539
    %v542 = vsub.s32 4, %v518
    %v543 = vsel %vm458, %v542, %v518
    %v544 = vsel %vm457, %v146, %v541
    %v545 = vsel %vm457, 0, %v543
    %v546 = vcosq.f32.pop %v544
    %v547 = vsinq.f32.pop %v544
    %vm548 = vweird.f32 %v146
    %v549 = vand.u32 %v545, 3
    %vm550 = vcmp.lt.s32.totalorder %v549, 2
    %vm551 = vcmp.eq.s32.totalorder %v549, 0
    %v552 = vxor.u32 %v547, 2147483648
    %v553 = vsel %vm551, %v546, %v552
    %vm554 = vcmp.eq.s32.totalorder %v549, 2
    %v555 = vxor.u32 %v546, 2147483648
    %v556 = vsel %vm554, %v555, %v547
    %v557 = vsel %vm550, %v553, %v556
    %v558 = vsel %vm548, nan, %v557
    %v559 = vpack.c.bf16 %v352, %v249
    %v560 = vpack.c.bf16 %v558, %v455
    %v561 = vld [vmem:[#allocation10] sm:$0xff]
    %v562 = vld [vmem:[#allocation10 + $0x8] sm:$0xff]
    %v563 = vld [vmem:[#allocation10 + $0x10] sm:$0xf]
    %v564 = vld [vmem:[#allocation10 + $0x14] sm:$0xff]
    %v565 = vld [vmem:[#allocation10 + $0x1c] sm:$0xff]
    %v566 = vld [vmem:[#allocation10 + $0x24] sm:$0xf]
    %v567 = vld [vmem:[#allocation10 + $0x28] sm:$0xff]
    %v568 = vld [vmem:[#allocation10 + $0x30] sm:$0xff]
    %v569 = vld [vmem:[#allocation10 + $0x38] sm:$0xf]
    %v570 = vld [vmem:[#allocation10 + $0x3c] sm:$0xff]
    %v571 = vld [vmem:[#allocation10 + $0x44] sm:$0xff]
    %v572 = vld [vmem:[#allocation10 + $0x4c] sm:$0xf]
    %v573 = vld [vmem:[#allocation10 + $0x50] sm:$0xff]
    %v574 = vld [vmem:[#allocation10 + $0x58] sm:$0xff]
    %v575 = vld [vmem:[#allocation10 + $0x60] sm:$0xf]
    %v576 = vld [vmem:[#allocation10 + $0x64] sm:$0xff]
    %v577 = vld [vmem:[#allocation10 + $0x6c] sm:$0xff]
    %v578 = vld [vmem:[#allocation10 + $0x74] sm:$0xf]
    %v579 = vld [vmem:[#allocation10 + $0x78] sm:$0xff]
    %v580 = vld [vmem:[#allocation10 + $0x80] sm:$0xff]
    %v581 = vld [vmem:[#allocation10 + $0x88] sm:$0xf]
    %v582 = vld [vmem:[#allocation10 + $0x8c] sm:$0xff]
    %v583 = vld [vmem:[#allocation10 + $0x94] sm:$0xff]
    %v584 = vld [vmem:[#allocation10 + $0x9c] sm:$0xf]
    %v585 = vld [vmem:[#allocation10 + $0xa0] sm:$0xff]
    %v586 = vld [vmem:[#allocation10 + $0xa8] sm:$0xff]
    %v587 = vld [vmem:[#allocation10 + $0xb0] sm:$0xf]
    %v588 = vld [vmem:[#allocation10 + $0xb4] sm:$0xff]
    %v589 = vld [vmem:[#allocation10 + $0xbc] sm:$0xff]
    %v590 = vld [vmem:[#allocation10 + $0xc4] sm:$0xf]
    %v591 = vld [vmem:[#allocation10 + $0xc8] sm:$0xff]
    %v592 = vld [vmem:[#allocation10 + $0xd0] sm:$0xff]
    %v593 = vld [vmem:[#allocation10 + $0xd8] sm:$0xf]
    %v594 = vld [vmem:[#allocation10 + $0xdc] sm:$0xff]
    %v595 = vld [vmem:[#allocation10 + $0xe4] sm:$0xff]
    %v596 = vld [vmem:[#allocation10 + $0xec] sm:$0xf]
    %v597 = vld [vmem:[#allocation10 + $0xf0] sm:$0xff]
    %v598 = vld [vmem:[#allocation10 + $0xf8] sm:$0xff]
    %v599 = vld [vmem:[#allocation10 + $0x100] sm:$0xf]
    %v600 = vld [vmem:[#allocation10 + $0x104] sm:$0xff]
    %v601 = vld [vmem:[#allocation10 + $0x10c] sm:$0xff]
    %v602 = vld [vmem:[#allocation10 + $0x114] sm:$0xf]
    %v603 = vld [vmem:[#allocation10 + $0x118] sm:$0xff]
    %v604 = vld [vmem:[#allocation10 + $0x120] sm:$0xff]
    %v605 = vld [vmem:[#allocation10 + $0x128] sm:$0xf]
    %v606 = vld [vmem:[#allocation10 + $0x12c] sm:$0xff]
    %v607 = vld [vmem:[#allocation10 + $0x134] sm:$0xff]
    %v608 = vld [vmem:[#allocation10 + $0x13c] sm:$0xf]
    %v609 = vand.u32 2147483647, %v143
    %vm610 = vcmp.le.f32.partialorder %v609, 0.7853982
    %vm611 = vcmp.lt.s32.totalorder %v143, 0
    %v612 = vand.u32 %v143, 2139095040
    %v613 = vshrl.u32 %v612, 23
    %v614 = vsub.s32 %v613, 127
    %v615 = vand.u32 2147483647, %v143
    %v616 = vand.u32 %v615, 8388607
    %v617 = vor.u32 %v616, 8388608
    %v618 = vsub.s32 0, %v617
    %v619 = vadd.s32 %v614, 1
    %vm620 = vcmp.gt.s32.totalorder %v619, 0
    %v621 = vsel %vm620, %v619, 0
    %v622 = vshrl.u32 %v621, 5
    %v623 = vand.u32 %v621, 31
    %v624 = vsub.s32 32, %v623
    %v625 = vshrl.u32 683565275, %v624
    %v626 = vshll.u32 683565275, %v623
    %v627 = vshrl.u32 2475754826, %v624
    %v628 = vor.u32 %v626, %v627
    %v629 = vshll.u32 2475754826, %v623
    %v630 = vshrl.u32 2131351028, %v624
    %v631 = vor.u32 %v629, %v630
    %v632 = vshll.u32 2131351028, %v623
    %v633 = vshrl.u32 2102212464, %v624
    %v634 = vor.u32 %v632, %v633
    %v635 = vshll.u32 2102212464, %v623
    %v636 = vshrl.u32 920167782, %v624
    %v637 = vor.u32 %v635, %v636
    %v638 = vshll.u32 920167782, %v623
    %v639 = vshrl.u32 1326507024, %v624
    %v640 = vor.u32 %v638, %v639
    %vm641 = vcmp.lt.s32.totalorder %v622, 1
    %vm642 = vcmp.lt.s32.totalorder %v622, 2
    %vm643 = vcmp.lt.s32.totalorder %v622, 3
    %vm644 = vcmp.lt.s32.totalorder %v622, 4
    %v645 = vsel %vm641, %v625, %v628
    %v646 = vsel %vm644, %v634, 2102212464
    %v647 = vsel %vm643, %v631, %v646
    %v648 = vsel %vm642, %v645, %v647
    %v649 = vsel %vm641, %v628, %v631
    %v650 = vsel %vm644, %v637, 920167782
    %v651 = vsel %vm643, %v634, %v650
    %v652 = vsel %vm642, %v649, %v651
    %v653 = vsel %vm641, %v631, %v634
    %v654 = vsel %vm644, %v640, 1326507024
    %v655 = vsel %vm643, %v637, %v654
    %v656 = vsel %vm642, %v653, %v655
    %v657 = vshll.u32 %v617, 8
    %v658 = vmul.u32.u64.compose %v657, %v656
    %v659 = vextract.low.u32 %v658
    %v660 = vextract.high.u32 %v658
    %v661 = vmul.u32.u64.compose %v657, %v652
    %v662 = vextract.low.u32 %v661
    %v663 = vextract.high.u32 %v661
    %v664 = vmul.u32 %v657, %v648
    %v665 = vadd.s32 %v660, %v662
    %vm666 = vc.u32 %v660, %v662
    %v667 = vadd.s32 %v663, 1
    %v668 = vsel %vm666, %v667, %v663
    %v669 = vadd.s32 %v664, %v668
    %v670 = vadd.s32 %v669, 536870912
    %v671 = vshrl.u32 %v670, 30
    %v672 = vshll.u32 %v671, 30
    %v673 = vsub.s32 %v669, %v672
    %vm674 = vcmp.lt.s32.totalorder %v673, 0
    %v675 = vsub.s32 0, %v673
    %v676 = vsel %vm674, %v675, %v673
    %v677 = vclz %v676
    %v678 = vsub.s32 %v677, 2
    %vm679 = vcmp.gt.s32.totalorder 0, %v678
    %v680 = vsel %vm679, 0, %v678
    %v681 = vsub.s32 32, %v680
    %v682 = vshll.u32 %v673, %v680
    %v683 = vshrl.u32 %v665, %v681
    %v684 = vor.u32 %v682, %v683
    %v685 = vsub.s32 4294967266, %v680
    %v686 = vadd.s32 %v685, 127
    %v687 = vshll.u32 %v686, 23
    %v688 = vor.u32 4788187, %v687
    %v689 = vand.u32 2147483647, %v688
    %v691 = vcvt.s32.f32 %v684
    %v692 = vmul.f32 %v691, %v689
    %v693 = vxor.u32 %v692, 2147483648
    %v694 = vsel %vm611, %v693, %v692
    %v695 = vsub.s32 4, %v671
    %v696 = vsel %vm611, %v695, %v671
    %v697 = vsel %vm610, %v143, %v694
    %v698 = vsel %vm610, 0, %v696
    %v699 = vcosq.f32.pop %v697
    %v700 = vsinq.f32.pop %v697
    %vm701 = vweird.f32 %v143
    %v702 = vadd.s32 %v698, 3
    %v703 = vand.u32 %v702, 3
    %vm704 = vcmp.lt.s32.totalorder %v703, 2
    %vm705 = vcmp.eq.s32.totalorder %v703, 0
    %v706 = vxor.u32 %v700, 2147483648
    %v707 = vsel %vm705, %v699, %v706
    %vm708 = vcmp.eq.s32.totalorder %v703, 2
    %v709 = vxor.u32 %v699, 2147483648
    %v710 = vsel %vm708, %v709, %v700
    %v711 = vsel %vm704, %v707, %v710
    %v712 = vsel %vm701, nan, %v711
    %v713 = vand.u32 2147483647, %v144
    %vm714 = vcmp.le.f32.partialorder %v713, 0.7853982
    %vm715 = vcmp.lt.s32.totalorder %v144, 0
    %v716 = vand.u32 %v144, 2139095040
    %v717 = vshrl.u32 %v716, 23
    %v718 = vsub.s32 %v717, 127
    %v719 = vand.u32 2147483647, %v144
    %v720 = vand.u32 %v719, 8388607
    %v721 = vor.u32 %v720, 8388608
    %v722 = vsub.s32 0, %v721
    %v723 = vadd.s32 %v718, 1
    %vm724 = vcmp.gt.s32.totalorder %v723, 0
    %v725 = vsel %vm724, %v723, 0
    %v726 = vshrl.u32 %v725, 5
    %v727 = vand.u32 %v725, 31
    %v728 = vsub.s32 32, %v727
    %v729 = vshrl.u32 683565275, %v728
    %v730 = vshll.u32 683565275, %v727
    %v731 = vshrl.u32 2475754826, %v728
    %v732 = vor.u32 %v730, %v731
    %v733 = vshll.u32 2475754826, %v727
    %v734 = vshrl.u32 2131351028, %v728
    %v735 = vor.u32 %v733, %v734
    %v736 = vshll.u32 2131351028, %v727
    %v737 = vshrl.u32 2102212464, %v728
    %v738 = vor.u32 %v736, %v737
    %v739 = vshll.u32 2102212464, %v727
    %v740 = vshrl.u32 920167782, %v728
    %v741 = vor.u32 %v739, %v740
    %v742 = vshll.u32 920167782, %v727
    %v743 = vshrl.u32 1326507024, %v728
    %v744 = vor.u32 %v742, %v743
    %vm745 = vcmp.lt.s32.totalorder %v726, 1
    %vm746 = vcmp.lt.s32.totalorder %v726, 2
    %vm747 = vcmp.lt.s32.totalorder %v726, 3
    %vm748 = vcmp.lt.s32.totalorder %v726, 4
    %v749 = vsel %vm745, %v729, %v732
    %v750 = vsel %vm748, %v738, 2102212464
    %v751 = vsel %vm747, %v735, %v750
    %v752 = vsel %vm746, %v749, %v751
    %v753 = vsel %vm745, %v732, %v735
    %v754 = vsel %vm748, %v741, 920167782
    %v755 = vsel %vm747, %v738, %v754
    %v756 = vsel %vm746, %v753, %v755
    %v757 = vsel %vm745, %v735, %v738
    %v758 = vsel %vm748, %v744, 1326507024
    %v759 = vsel %vm747, %v741, %v758
    %v760 = vsel %vm746, %v757, %v759
    %v761 = vshll.u32 %v721, 8
    %v762 = vmul.u32.u64.compose %v761, %v760
    %v763 = vextract.low.u32 %v762
    %v764 = vextract.high.u32 %v762
    %v765 = vmul.u32.u64.compose %v761, %v756
    %v766 = vextract.low.u32 %v765
    %v767 = vextract.high.u32 %v765
    %v768 = vmul.u32 %v761, %v752
    %v769 = vadd.s32 %v764, %v766
    %vm770 = vc.u32 %v764, %v766
    %v771 = vadd.s32 %v767, 1
    %v772 = vsel %vm770, %v771, %v767
    %v773 = vadd.s32 %v768, %v772
    %v774 = vadd.s32 %v773, 536870912
    %v775 = vshrl.u32 %v774, 30
    %v776 = vshll.u32 %v775, 30
    %v777 = vsub.s32 %v773, %v776
    %vm778 = vcmp.lt.s32.totalorder %v777, 0
    %v779 = vsub.s32 0, %v777
    %v780 = vsel %vm778, %v779, %v777
    %v781 = vclz %v780
    %v782 = vsub.s32 %v781, 2
    %vm783 = vcmp.gt.s32.totalorder 0, %v782
    %v784 = vsel %vm783, 0, %v782
    %v785 = vsub.s32 32, %v784
    %v786 = vshll.u32 %v777, %v784
    %v787 = vshrl.u32 %v769, %v785
    %v788 = vor.u32 %v786, %v787
    %v789 = vsub.s32 4294967266, %v784
    %v790 = vadd.s32 %v789, 127
    %v791 = vshll.u32 %v790, 23
    %v792 = vor.u32 4788187, %v791
    %v793 = vand.u32 2147483647, %v792
    %v795 = vcvt.s32.f32 %v788
    %v796 = vmul.f32 %v795, %v793
    %v797 = vxor.u32 %v796, 2147483648
    %v798 = vsel %vm715, %v797, %v796
    %v799 = vsub.s32 4, %v775
    %v800 = vsel %vm715, %v799, %v775
    %v801 = vsel %vm714, %v144, %v798
    %v802 = vsel %vm714, 0, %v800
    %v803 = vcosq.f32.pop %v801
    %v804 = vsinq.f32.pop %v801
    %vm805 = vweird.f32 %v144
    %v806 = vadd.s32 %v802, 3
    %v807 = vand.u32 %v806, 3
    %vm808 = vcmp.lt.s32.totalorder %v807, 2
    %vm809 = vcmp.eq.s32.totalorder %v807, 0
    %v810 = vxor.u32 %v804, 2147483648
    %v811 = vsel %vm809, %v803, %v810
    %vm812 = vcmp.eq.s32.totalorder %v807, 2
    %v813 = vxor.u32 %v803, 2147483648
    %v814 = vsel %vm812, %v813, %v804
    %v815 = vsel %vm808, %v811, %v814
    %v816 = vsel %vm805, nan, %v815
    %v817 = vand.u32 2147483647, %v145
    %vm818 = vcmp.le.f32.partialorder %v817, 0.7853982
    %vm819 = vcmp.lt.s32.totalorder %v145, 0
    %v820 = vand.u32 %v145, 2139095040
    %v821 = vshrl.u32 %v820, 23
    %v822 = vsub.s32 %v821, 127
    %v823 = vand.u32 2147483647, %v145
    %v824 = vand.u32 %v823, 8388607
    %v825 = vor.u32 %v824, 8388608
    %v826 = vsub.s32 0, %v825
    %v827 = vadd.s32 %v822, 1
    %vm828 = vcmp.gt.s32.totalorder %v827, 0
    %v829 = vsel %vm828, %v827, 0
    %v830 = vshrl.u32 %v829, 5
    %v831 = vand.u32 %v829, 31
    %v832 = vsub.s32 32, %v831
    %v833 = vshrl.u32 683565275, %v832
    %v834 = vshll.u32 683565275, %v831
    %v835 = vshrl.u32 2475754826, %v832
    %v836 = vor.u32 %v834, %v835
    %v837 = vshll.u32 2475754826, %v831
    %v838 = vshrl.u32 2131351028, %v832
    %v839 = vor.u32 %v837, %v838
    %v840 = vshll.u32 2131351028, %v831
    %v841 = vshrl.u32 2102212464, %v832
    %v842 = vor.u32 %v840, %v841
    %v843 = vshll.u32 2102212464, %v831
    %v844 = vshrl.u32 920167782, %v832
    %v845 = vor.u32 %v843, %v844
    %v846 = vshll.u32 920167782, %v831
    %v847 = vshrl.u32 1326507024, %v832
    %v848 = vor.u32 %v846, %v847
    %vm849 = vcmp.lt.s32.totalorder %v830, 1
    %vm850 = vcmp.lt.s32.totalorder %v830, 2
    %vm851 = vcmp.lt.s32.totalorder %v830, 3
    %vm852 = vcmp.lt.s32.totalorder %v830, 4
    %v853 = vsel %vm849, %v833, %v836
    %v854 = vsel %vm852, %v842, 2102212464
    %v855 = vsel %vm851, %v839, %v854
    %v856 = vsel %vm850, %v853, %v855
    %v857 = vsel %vm849, %v836, %v839
    %v858 = vsel %vm852, %v845, 920167782
    %v859 = vsel %vm851, %v842, %v858
    %v860 = vsel %vm850, %v857, %v859
    %v861 = vsel %vm849, %v839, %v842
    %v862 = vsel %vm852, %v848, 1326507024
    %v863 = vsel %vm851, %v845, %v862
    %v864 = vsel %vm850, %v861, %v863
    %v865 = vshll.u32 %v825, 8
    %v866 = vmul.u32.u64.compose %v865, %v864
    %v867 = vextract.low.u32 %v866
    %v868 = vextract.high.u32 %v866
    %v869 = vmul.u32.u64.compose %v865, %v860
    %v870 = vextract.low.u32 %v869
    %v871 = vextract.high.u32 %v869
    %v872 = vmul.u32 %v865, %v856
    %v873 = vadd.s32 %v868, %v870
    %vm874 = vc.u32 %v868, %v870
    %v875 = vadd.s32 %v871, 1
    %v876 = vsel %vm874, %v875, %v871
    %v877 = vadd.s32 %v872, %v876
    %v878 = vadd.s32 %v877, 536870912
    %v879 = vshrl.u32 %v878, 30
    %v880 = vshll.u32 %v879, 30
    %v881 = vsub.s32 %v877, %v880
    %vm882 = vcmp.lt.s32.totalorder %v881, 0
    %v883 = vsub.s32 0, %v881
    %v884 = vsel %vm882, %v883, %v881
    %v885 = vclz %v884
    %v886 = vsub.s32 %v885, 2
    %vm887 = vcmp.gt.s32.totalorder 0, %v886
    %v888 = vsel %vm887, 0, %v886
    %v889 = vsub.s32 32, %v888
    %v890 = vshll.u32 %v881, %v888
    %v891 = vshrl.u32 %v873, %v889
    %v892 = vor.u32 %v890, %v891
    %v893 = vsub.s32 4294967266, %v888
    %v894 = vadd.s32 %v893, 127
    %v895 = vshll.u32 %v894, 23
    %v896 = vor.u32 4788187, %v895
    %v897 = vand.u32 2147483647, %v896
    %v899 = vcvt.s32.f32 %v892
    %v900 = vmul.f32 %v899, %v897
    %v901 = vxor.u32 %v900, 2147483648
    %v902 = vsel %vm819, %v901, %v900
    %v903 = vsub.s32 4, %v879
    %v904 = vsel %vm819, %v903, %v879
    %v905 = vsel %vm818, %v145, %v902
    %v906 = vsel %vm818, 0, %v904
    %v907 = vcosq.f32.pop %v905
    %v908 = vsinq.f32.pop %v905
    %vm909 = vweird.f32 %v145
    %v910 = vadd.s32 %v906, 3
    %v911 = vand.u32 %v910, 3
    %vm912 = vcmp.lt.s32.totalorder %v911, 2
    %vm913 = vcmp.eq.s32.totalorder %v911, 0
    %v914 = vxor.u32 %v908, 2147483648
    %v915 = vsel %vm913, %v907, %v914
    %vm916 = vcmp.eq.s32.totalorder %v911, 2
    %v917 = vxor.u32 %v907, 2147483648
    %v918 = vsel %vm916, %v917, %v908
    %v919 = vsel %vm912, %v915, %v918
    %v920 = vsel %vm909, nan, %v919
    %v921 = vand.u32 2147483647, %v146
    %vm922 = vcmp.le.f32.partialorder %v921, 0.7853982
    %vm923 = vcmp.lt.s32.totalorder %v146, 0
    %v924 = vand.u32 %v146, 2139095040
    %v925 = vshrl.u32 %v924, 23
    %v926 = vsub.s32 %v925, 127
    %v927 = vand.u32 2147483647, %v146
    %v928 = vand.u32 %v927, 8388607
    %v929 = vor.u32 %v928, 8388608
    %v930 = vsub.s32 0, %v929
    %v931 = vadd.s32 %v926, 1
    %vm932 = vcmp.gt.s32.totalorder %v931, 0
    %v933 = vsel %vm932, %v931, 0
    %v934 = vshrl.u32 %v933, 5
    %v935 = vand.u32 %v933, 31
    %v936 = vsub.s32 32, %v935
    %v937 = vshrl.u32 683565275, %v936
    %v938 = vshll.u32 683565275, %v935
    %v939 = vshrl.u32 2475754826, %v936
    %v940 = vor.u32 %v938, %v939
    %v941 = vshll.u32 2475754826, %v935
    %v942 = vshrl.u32 2131351028, %v936
    %v943 = vor.u32 %v941, %v942
    %v944 = vshll.u32 2131351028, %v935
    %v945 = vshrl.u32 2102212464, %v936
    %v946 = vor.u32 %v944, %v945
    %v947 = vshll.u32 2102212464, %v935
    %v948 = vshrl.u32 920167782, %v936
    %v949 = vor.u32 %v947, %v948
    %v950 = vshll.u32 920167782, %v935
    %v951 = vshrl.u32 1326507024, %v936
    %v952 = vor.u32 %v950, %v951
    %vm953 = vcmp.lt.s32.totalorder %v934, 1
    %vm954 = vcmp.lt.s32.totalorder %v934, 2
    %vm955 = vcmp.lt.s32.totalorder %v934, 3
    %vm956 = vcmp.lt.s32.totalorder %v934, 4
    %v957 = vsel %vm953, %v937, %v940
    %v958 = vsel %vm956, %v946, 2102212464
    %v959 = vsel %vm955, %v943, %v958
    %v960 = vsel %vm954, %v957, %v959
    %v961 = vsel %vm953, %v940, %v943
    %v962 = vsel %vm956, %v949, 920167782
    %v963 = vsel %vm955, %v946, %v962
    %v964 = vsel %vm954, %v961, %v963
    %v965 = vsel %vm953, %v943, %v946
    %v966 = vsel %vm956, %v952, 1326507024
    %v967 = vsel %vm955, %v949, %v966
    %v968 = vsel %vm954, %v965, %v967
    %v969 = vshll.u32 %v929, 8
    %v970 = vmul.u32.u64.compose %v969, %v968
    %v971 = vextract.low.u32 %v970
    %v972 = vextract.high.u32 %v970
    %v973 = vmul.u32.u64.compose %v969, %v964
    %v974 = vextract.low.u32 %v973
    %v975 = vextract.high.u32 %v973
    %v976 = vmul.u32 %v969, %v960
    %v977 = vadd.s32 %v972, %v974
    %vm978 = vc.u32 %v972, %v974
    %v979 = vadd.s32 %v975, 1
    %v980 = vsel %vm978, %v979, %v975
    %v981 = vadd.s32 %v976, %v980
    %v982 = vadd.s32 %v981, 536870912
    %v983 = vshrl.u32 %v982, 30
    %v984 = vshll.u32 %v983, 30
    %v985 = vsub.s32 %v981, %v984
    %vm986 = vcmp.lt.s32.totalorder %v985, 0
    %v987 = vsub.s32 0, %v985
    %v988 = vsel %vm986, %v987, %v985
    %v989 = vclz %v988
    %v990 = vsub.s32 %v989, 2
    %vm991 = vcmp.gt.s32.totalorder 0, %v990
    %v992 = vsel %vm991, 0, %v990
    %v993 = vsub.s32 32, %v992
    %v994 = vshll.u32 %v985, %v992
    %v995 = vshrl.u32 %v977, %v993
    %v996 = vor.u32 %v994, %v995
    %v997 = vsub.s32 4294967266, %v992
    %v998 = vadd.s32 %v997, 127
    %v999 = vshll.u32 %v998, 23
    %v1000 = vor.u32 4788187, %v999
    %v1001 = vand.u32 2147483647, %v1000
    %v1003 = vcvt.s32.f32 %v996
    %v1004 = vmul.f32 %v1003, %v1001
    %v1005 = vxor.u32 %v1004, 2147483648
    %v1006 = vsel %vm923, %v1005, %v1004
    %v1007 = vsub.s32 4, %v983
    %v1008 = vsel %vm923, %v1007, %v983
    %v1009 = vsel %vm922, %v146, %v1006
    %v1010 = vsel %vm922, 0, %v1008
    %v1011 = vcosq.f32.pop %v1009
    %v1012 = vsinq.f32.pop %v1009
    %vm1013 = vweird.f32 %v146
    %v1014 = vadd.s32 %v1010, 3
    %v1015 = vand.u32 %v1014, 3
    %vm1016 = vcmp.lt.s32.totalorder %v1015, 2
    %vm1017 = vcmp.eq.s32.totalorder %v1015, 0
    %v1018 = vxor.u32 %v1012, 2147483648
    %v1019 = vsel %vm1017, %v1011, %v1018
    %vm1020 = vcmp.eq.s32.totalorder %v1015, 2
    %v1021 = vxor.u32 %v1011, 2147483648
    %v1022 = vsel %vm1020, %v1021, %v1012
    %v1023 = vsel %vm1016, %v1019, %v1022
    %v1024 = vsel %vm1013, nan, %v1023
    %v1025 = vpack.c.bf16 %v816, %v712
    %v1026 = vpack.c.bf16 %v1024, %v920
    %v1027 = vld [vmem:[#allocation10 + $0x140] sm:$0xff]
    %v1028 = vld [vmem:[#allocation10 + $0x148] sm:$0xff]
    %v1029 = vld [vmem:[#allocation10 + $0x150] sm:$0xf]
    %v1030 = vld [vmem:[#allocation10 + $0x154] sm:$0xff]
    %v1031 = vld [vmem:[#allocation10 + $0x15c] sm:$0xff]
    %v1032 = vld [vmem:[#allocation10 + $0x164] sm:$0xf]
    %v1033 = vld [vmem:[#allocation10 + $0x168] sm:$0xff]
    %v1034 = vld [vmem:[#allocation10 + $0x170] sm:$0xff]
    %v1035 = vld [vmem:[#allocation10 + $0x178] sm:$0xf]
    %v1036 = vld [vmem:[#allocation10 + $0x17c] sm:$0xff]
    %v1037 = vld [vmem:[#allocation10 + $0x184] sm:$0xff]
    %v1038 = vld [vmem:[#allocation10 + $0x18c] sm:$0xf]
    %v1039 = vld [vmem:[#allocation10 + $0x190] sm:$0xff]
    %v1040 = vld [vmem:[#allocation10 + $0x198] sm:$0xff]
    %v1041 = vld [vmem:[#allocation10 + $0x1a0] sm:$0xf]
    %v1042 = vld [vmem:[#allocation10 + $0x1a4] sm:$0xff]
    %v1043 = vld [vmem:[#allocation10 + $0x1ac] sm:$0xff]
    %v1044 = vld [vmem:[#allocation10 + $0x1b4] sm:$0xf]
    %v1045 = vld [vmem:[#allocation10 + $0x1b8] sm:$0xff]
    %v1046 = vld [vmem:[#allocation10 + $0x1c0] sm:$0xff]
    %v1047 = vld [vmem:[#allocation10 + $0x1c8] sm:$0xf]
    %v1048 = vld [vmem:[#allocation10 + $0x1cc] sm:$0xff]
    %v1049 = vld [vmem:[#allocation10 + $0x1d4] sm:$0xff]
    %v1050 = vld [vmem:[#allocation10 + $0x1dc] sm:$0xf]
    %v1051 = vld [vmem:[#allocation10 + $0x1e0] sm:$0xff]
    %v1052 = vld [vmem:[#allocation10 + $0x1e8] sm:$0xff]
    %v1053 = vld [vmem:[#allocation10 + $0x1f0] sm:$0xf]
    %v1054 = vld [vmem:[#allocation10 + $0x1f4] sm:$0xff]
    %v1055 = vld [vmem:[#allocation10 + $0x1fc] sm:$0xff]
    %v1056 = vld [vmem:[#allocation10 + $0x204] sm:$0xf]
    %v1057 = vld [vmem:[#allocation10 + $0x208] sm:$0xff]
    %v1058 = vld [vmem:[#allocation10 + $0x210] sm:$0xff]
    %v1059 = vld [vmem:[#allocation10 + $0x218] sm:$0xf]
    %v1060 = vld [vmem:[#allocation10 + $0x21c] sm:$0xff]
    %v1061 = vld [vmem:[#allocation10 + $0x224] sm:$0xff]
    %v1062 = vld [vmem:[#allocation10 + $0x22c] sm:$0xf]
    %v1063 = vld [vmem:[#allocation10 + $0x230] sm:$0xff]
    %v1064 = vld [vmem:[#allocation10 + $0x238] sm:$0xff]
    %v1065 = vld [vmem:[#allocation10 + $0x240] sm:$0xf]
    %v1066 = vld [vmem:[#allocation10 + $0x244] sm:$0xff]
    %v1067 = vld [vmem:[#allocation10 + $0x24c] sm:$0xff]
    %v1068 = vld [vmem:[#allocation10 + $0x254] sm:$0xf]
    %v1069 = vld [vmem:[#allocation10 + $0x258] sm:$0xff]
    %v1070 = vld [vmem:[#allocation10 + $0x260] sm:$0xff]
    %v1071 = vld [vmem:[#allocation10 + $0x268] sm:$0xf]
    %v1072 = vld [vmem:[#allocation10 + $0x26c] sm:$0xff]
    %v1073 = vld [vmem:[#allocation10 + $0x274] sm:$0xff]
    %v1074 = vld [vmem:[#allocation10 + $0x27c] sm:$0xf]
    %v1123 = vunpack.c.l.b16 %v1027
    %v1124 = vunpack.c.h.b16 %v1027
    %v1125 = vunpack.c.l.b16 %v1028
    %v1126 = vunpack.c.h.b16 %v1028
    %v1127 = vunpack.c.l.b16 %v1029
    %v1128 = vunpack.c.l.b16 %v1030
    %v1129 = vunpack.c.h.b16 %v1030
    %v1130 = vunpack.c.l.b16 %v1031
    %v1131 = vunpack.c.h.b16 %v1031
    %v1132 = vunpack.c.l.b16 %v1032
    %v1133 = vunpack.c.l.b16 %v1033
    %v1134 = vunpack.c.h.b16 %v1033
    %v1135 = vunpack.c.l.b16 %v1034
    %v1136 = vunpack.c.h.b16 %v1034
    %v1137 = vunpack.c.l.b16 %v1035
    %v1138 = vunpack.c.l.b16 %v1036
    %v1139 = vunpack.c.h.b16 %v1036
    %v1140 = vunpack.c.l.b16 %v1037
    %v1141 = vunpack.c.h.b16 %v1037
    %v1142 = vunpack.c.l.b16 %v1038
    %v1143 = vunpack.c.l.b16 %v1039
    %v1144 = vunpack.c.h.b16 %v1039
    %v1145 = vunpack.c.l.b16 %v1040
    %v1146 = vunpack.c.h.b16 %v1040
    %v1147 = vunpack.c.l.b16 %v1041
    %v1148 = vunpack.c.l.b16 %v1042
    %v1149 = vunpack.c.h.b16 %v1042
    %v1150 = vunpack.c.l.b16 %v1043
    %v1151 = vunpack.c.h.b16 %v1043
    %v1152 = vunpack.c.l.b16 %v1044
    %v1153 = vunpack.c.l.b16 %v1045
    %v1154 = vunpack.c.h.b16 %v1045
    %v1155 = vunpack.c.l.b16 %v1046
    %v1156 = vunpack.c.h.b16 %v1046
    %v1157 = vunpack.c.l.b16 %v1047
    %v1158 = vunpack.c.l.b16 %v1048
    %v1159 = vunpack.c.h.b16 %v1048
    %v1160 = vunpack.c.l.b16 %v1049
    %v1161 = vunpack.c.h.b16 %v1049
    %v1162 = vunpack.c.l.b16 %v1050
    %v1163 = vunpack.c.l.b16 %v1051
    %v1164 = vunpack.c.h.b16 %v1051
    %v1165 = vunpack.c.l.b16 %v1052
    %v1166 = vunpack.c.h.b16 %v1052
    %v1167 = vunpack.c.l.b16 %v1053
    %v1168 = vunpack.c.l.b16 %v1054
    %v1169 = vunpack.c.h.b16 %v1054
    %v1170 = vunpack.c.l.b16 %v1055
    %v1171 = vunpack.c.h.b16 %v1055
    %v1172 = vunpack.c.l.b16 %v1056
    %v1173 = vunpack.c.l.b16 %v1057
    %v1174 = vunpack.c.h.b16 %v1057
    %v1175 = vunpack.c.l.b16 %v1058
    %v1176 = vunpack.c.h.b16 %v1058
    %v1177 = vunpack.c.l.b16 %v1059
    %v1178 = vunpack.c.l.b16 %v1060
    %v1179 = vunpack.c.h.b16 %v1060
    %v1180 = vunpack.c.l.b16 %v1061
    %v1181 = vunpack.c.h.b16 %v1061
    %v1182 = vunpack.c.l.b16 %v1062
    %v1183 = vunpack.c.l.b16 %v1063
    %v1184 = vunpack.c.h.b16 %v1063
    %v1185 = vunpack.c.l.b16 %v1064
    %v1186 = vunpack.c.h.b16 %v1064
    %v1187 = vunpack.c.l.b16 %v1065
    %v1188 = vunpack.c.l.b16 %v1066
    %v1189 = vunpack.c.h.b16 %v1066
    %v1190 = vunpack.c.l.b16 %v1067
    %v1191 = vunpack.c.h.b16 %v1067
    %v1192 = vunpack.c.l.b16 %v1068
    %v1193 = vunpack.c.l.b16 %v1069
    %v1194 = vunpack.c.h.b16 %v1069
    %v1195 = vunpack.c.l.b16 %v1070
    %v1196 = vunpack.c.h.b16 %v1070
    %v1197 = vunpack.c.l.b16 %v1071
    %v1198 = vunpack.c.l.b16 %v1072
    %v1199 = vunpack.c.h.b16 %v1072
    %v1200 = vunpack.c.l.b16 %v1073
    %v1201 = vunpack.c.h.b16 %v1073
    %v1202 = vunpack.c.l.b16 %v1074
    %v1203 = vpack.c.b16 %v1128, %v1123
    %v1204 = vpack.c.b16 %v1129, %v1124
    %v1205 = vpack.c.b16 %v1130, %v1125
    %v1206 = vpack.c.b16 %v1131, %v1126
    %v1207 = vpack.c.b16 %v1132, %v1127
    %v1208 = vpack.c.b16 %v1138, %v1133
    %v1209 = vpack.c.b16 %v1139, %v1134
    %v1210 = vpack.c.b16 %v1140, %v1135
    %v1211 = vpack.c.b16 %v1141, %v1136
    %v1212 = vpack.c.b16 %v1142, %v1137
    %v1213 = vpack.c.b16 %v1148, %v1143
    %v1214 = vpack.c.b16 %v1149, %v1144
    %v1215 = vpack.c.b16 %v1150, %v1145
    %v1216 = vpack.c.b16 %v1151, %v1146
    %v1217 = vpack.c.b16 %v1152, %v1147
    %v1218 = vpack.c.b16 %v1158, %v1153
    %v1219 = vpack.c.b16 %v1159, %v1154
    %v1220 = vpack.c.b16 %v1160, %v1155
    %v1221 = vpack.c.b16 %v1161, %v1156
    %v1222 = vpack.c.b16 %v1162, %v1157
    %v1223 = vpack.c.b16 %v1168, %v1163
    %v1224 = vpack.c.b16 %v1169, %v1164
    %v1225 = vpack.c.b16 %v1170, %v1165
    %v1226 = vpack.c.b16 %v1171, %v1166
    %v1227 = vpack.c.b16 %v1172, %v1167
    %v1228 = vpack.c.b16 %v1178, %v1173
    %v1229 = vpack.c.b16 %v1179, %v1174
    %v1230 = vpack.c.b16 %v1180, %v1175
    %v1231 = vpack.c.b16 %v1181, %v1176
    %v1232 = vpack.c.b16 %v1182, %v1177
    %v1233 = vpack.c.b16 %v1188, %v1183
    %v1234 = vpack.c.b16 %v1189, %v1184
    %v1235 = vpack.c.b16 %v1190, %v1185
    %v1236 = vpack.c.b16 %v1191, %v1186
    %v1237 = vpack.c.b16 %v1192, %v1187
    %v1238 = vpack.c.b16 %v1198, %v1193
    %v1239 = vpack.c.b16 %v1199, %v1194
    %v1240 = vpack.c.b16 %v1200, %v1195
    %v1241 = vpack.c.b16 %v1201, %v1196
    %v1242 = vpack.c.b16 %v1202, %v1197
    %1283 = vmatprep.subr.bf16.mxu0 %v1239
    %1284 = vmatpush1.bf16.msra.mxu0 %v1238
    %1285 = vmatprep.subr.bf16.mxu0 %v1234
    %1286 = vmatpush1.bf16.msra.mxu0 %v1233
    %1287 = vmatprep.subr.bf16.mxu0 %v1229
    %1288 = vmatpush1.bf16.msra.mxu0 %v1228
    %1289 = vmatprep.subr.bf16.mxu0 %v1224
    %1290 = vmatpush1.bf16.msra.mxu0 %v1223
    %1291 = vmatprep.subr.bf16.mxu0 %v1219
    %1292 = vmatpush1.bf16.msra.mxu0 %v1218
    %1293 = vmatprep.subr.bf16.mxu0 %v1214
    %1294 = vmatpush1.bf16.msra.mxu0 %v1213
    %1295 = vmatprep.subr.bf16.mxu0 %v1209
    %1296 = vmatpush1.bf16.msra.mxu0 %v1208
    %1297 = vmatprep.subr.bf16.mxu0 %v1204
    %1298 = vmatpush1.bf16.msra.mxu0 %v1203
    %1299 = vmatprep.subr.bf16.mxu0 0
    %1300 = vmatpush2.bf16.msra.mxu0 0
    %1301 = vmatprep.subr.bf16.mxu0 0
    %1302 = vmatpush2.bf16.msra.mxu0 0
    %1303 = vmatprep.subr.bf16.mxu0 0
    %1304 = vmatpush2.bf16.msra.mxu0 0
    %1305 = vmatprep.subr.bf16.mxu0 0
    %1306 = vmatpush2.bf16.msra.mxu0 0
    %1307 = vmatprep.subr.bf16.mxu0 0
    %1308 = vmatpush2.bf16.msra.mxu0 0
    %1309 = vmatprep.subr.bf16.mxu0 0
    %1310 = vmatpush2.bf16.msra.mxu0 0
    %1311 = vmatprep.subr.bf16.mxu0 0
    %1312 = vmatpush2.bf16.msra.mxu0 0
    %1313 = vmatprep.subr.bf16.mxu0 0
    %1314 = vmatpush2.bf16.msra.mxu0 0
    %1315 = vmatprep.mubr.bf16.mxu0 0
    %1316 = vmatmul.mubr.bf16.gmra.mxu0 %v1025
    %v1317 = vpop.f32.mrf.mxu0
    %v1318 = vadd.f32 0.0, %v1317
    %v1319 = vpop.f32.mrf.mxu0
    %v1320 = vadd.f32 0.0, %v1319
    %v1321 = vpop.f32.mrf.mxu0
    %v1322 = vpop.f32.mrf.mxu0
    %1323 = vmatprep.mubr.bf16.mxu0 0
    %1324 = vmatmul.mubr.bf16.gmra.mxu0 %v1026
    %v1325 = vpop.f32.mrf.mxu0
    %v1326 = vpop.f32.mrf.mxu0
    %v1327 = vpop.f32.mrf.mxu0
    %v1328 = vpop.f32.mrf.mxu0
    %1329 = vdwg.mxu0
    %1330 = vmatprep.subr.bf16.mxu0 %v1241
    %1331 = vmatpush1.bf16.msra.mxu0 %v1240
    %1332 = vmatprep.subr.bf16.mxu0 %v1236
    %1333 = vmatpush1.bf16.msra.mxu0 %v1235
    %1334 = vmatprep.subr.bf16.mxu0 %v1231
    %1335 = vmatpush1.bf16.msra.mxu0 %v1230
    %1336 = vmatprep.subr.bf16.mxu0 %v1226
    %1337 = vmatpush1.bf16.msra.mxu0 %v1225
    %1338 = vmatprep.subr.bf16.mxu0 %v1221
    %1339 = vmatpush1.bf16.msra.mxu0 %v1220
    %1340 = vmatprep.subr.bf16.mxu0 %v1216
    %1341 = vmatpush1.bf16.msra.mxu0 %v1215
    %1342 = vmatprep.subr.bf16.mxu0 %v1211
    %1343 = vmatpush1.bf16.msra.mxu0 %v1210
    %1344 = vmatprep.subr.bf16.mxu0 %v1206
    %1345 = vmatpush1.bf16.msra.mxu0 %v1205
    %1346 = vmatprep.subr.bf16.mxu0 0
    %1347 = vmatpush2.bf16.msra.mxu0 0
    %1348 = vmatprep.subr.bf16.mxu0 0
    %1349 = vmatpush2.bf16.msra.mxu0 0
    %1350 = vmatprep.subr.bf16.mxu0 0
    %1351 = vmatpush2.bf16.msra.mxu0 0
    %1352 = vmatprep.subr.bf16.mxu0 0
    %1353 = vmatpush2.bf16.msra.mxu0 0
    %1354 = vmatprep.subr.bf16.mxu0 0
    %1355 = vmatpush2.bf16.msra.mxu0 0
    %1356 = vmatprep.subr.bf16.mxu0 0
    %1357 = vmatpush2.bf16.msra.mxu0 0
    %1358 = vmatprep.subr.bf16.mxu0 0
    %1359 = vmatpush2.bf16.msra.mxu0 0
    %1360 = vmatprep.subr.bf16.mxu0 0
    %1361 = vmatpush2.bf16.msra.mxu0 0
    %1362 = vmatprep.mubr.bf16.mxu0 0
    %1363 = vmatmul.mubr.bf16.gmra.mxu0 %v1025
    %v1364 = vpop.f32.mrf.mxu0
    %v1365 = vadd.f32 0.0, %v1364
    %v1366 = vpop.f32.mrf.mxu0
    %v1367 = vpop.f32.mrf.mxu0
    %v1368 = vpop.f32.mrf.mxu0
    %v1369 = vadd.f32 0.0, %v1368
    %1370 = vmatprep.mubr.bf16.mxu0 0
    %1371 = vmatmul.mubr.bf16.gmra.mxu0 %v1026
    %v1372 = vpop.f32.mrf.mxu0
    %v1373 = vpop.f32.mrf.mxu0
    %v1374 = vadd.f32 0.0, %v1373
    %v1375 = vpop.f32.mrf.mxu0
    %v1376 = vpop.f32.mrf.mxu0
    %1377 = vdwg.mxu0
    %1378 = vmatprep.subr.bf16.mxu0 0
    %1379 = vmatpush1.bf16.msra.mxu0 %v1242
    %1380 = vmatprep.subr.bf16.mxu0 0
    %1381 = vmatpush1.bf16.msra.mxu0 %v1237
    %1382 = vmatprep.subr.bf16.mxu0 0
    %1383 = vmatpush1.bf16.msra.mxu0 %v1232
    %1384 = vmatprep.subr.bf16.mxu0 0
    %1385 = vmatpush1.bf16.msra.mxu0 %v1227
    %1386 = vmatprep.subr.bf16.mxu0 0
    %1387 = vmatpush1.bf16.msra.mxu0 %v1222
    %1388 = vmatprep.subr.bf16.mxu0 0
    %1389 = vmatpush1.bf16.msra.mxu0 %v1217
    %1390 = vmatprep.subr.bf16.mxu0 0
    %1391 = vmatpush1.bf16.msra.mxu0 %v1212
    %1392 = vmatprep.subr.bf16.mxu0 0
    %1393 = vmatpush1.bf16.msra.mxu0 %v1207
    %1394 = vmatprep.subr.bf16.mxu0 0
    %1395 = vmatpush2.bf16.msra.mxu0 0
    %1396 = vmatprep.subr.bf16.mxu0 0
    %1397 = vmatpush2.bf16.msra.mxu0 0
    %1398 = vmatprep.subr.bf16.mxu0 0
    %1399 = vmatpush2.bf16.msra.mxu0 0
    %1400 = vmatprep.subr.bf16.mxu0 0
    %1401 = vmatpush2.bf16.msra.mxu0 0
    %1402 = vmatprep.subr.bf16.mxu0 0
    %1403 = vmatpush2.bf16.msra.mxu0 0
    %1404 = vmatprep.subr.bf16.mxu0 0
    %1405 = vmatpush2.bf16.msra.mxu0 0
    %1406 = vmatprep.subr.bf16.mxu0 0
    %1407 = vmatpush2.bf16.msra.mxu0 0
    %1408 = vmatprep.subr.bf16.mxu0 0
    %1409 = vmatpush2.bf16.msra.mxu0 0
    %1410 = vmatprep.mubr.bf16.mxu0 0
    %1411 = vmatmul.mubr.bf16.gmra.mxu0 %v1025
    %v1412 = vpop.f32.mrf.mxu0
    %v1413 = vpop.f32.mrf.mxu0
    %v1414 = vpop.f32.mrf.mxu0
    %v1415 = vpop.f32.mrf.mxu0
    %1416 = vmatprep.mubr.bf16.mxu0 0
    %1417 = vmatmul.mubr.bf16.gmra.mxu0 %v1026
    %v1418 = vpop.f32.mrf.mxu0
    %v1419 = vpop.f32.mrf.mxu0
    %v1420 = vpop.f32.mrf.mxu0
    %v1421 = vadd.f32 0.0, %v1420
    %v1422 = vpop.f32.mrf.mxu0
    %1423 = vdwg.mxu0
    %v1472 = vunpack.c.l.b16 %v561
    %v1473 = vunpack.c.h.b16 %v561
    %v1474 = vunpack.c.l.b16 %v562
    %v1475 = vunpack.c.h.b16 %v562
    %v1476 = vunpack.c.l.b16 %v563
    %v1477 = vunpack.c.l.b16 %v564
    %v1478 = vunpack.c.h.b16 %v564
    %v1479 = vunpack.c.l.b16 %v565
    %v1480 = vunpack.c.h.b16 %v565
    %v1481 = vunpack.c.l.b16 %v566
    %v1482 = vunpack.c.l.b16 %v567
    %v1483 = vunpack.c.h.b16 %v567
    %v1484 = vunpack.c.l.b16 %v568
    %v1485 = vunpack.c.h.b16 %v568
    %v1486 = vunpack.c.l.b16 %v569
    %v1487 = vunpack.c.l.b16 %v570
    %v1488 = vunpack.c.h.b16 %v570
    %v1489 = vunpack.c.l.b16 %v571
    %v1490 = vunpack.c.h.b16 %v571
    %v1491 = vunpack.c.l.b16 %v572
    %v1492 = vunpack.c.l.b16 %v573
    %v1493 = vunpack.c.h.b16 %v573
    %v1494 = vunpack.c.l.b16 %v574
    %v1495 = vunpack.c.h.b16 %v574
    %v1496 = vunpack.c.l.b16 %v575
    %v1497 = vunpack.c.l.b16 %v576
    %v1498 = vunpack.c.h.b16 %v576
    %v1499 = vunpack.c.l.b16 %v577
    %v1500 = vunpack.c.h.b16 %v577
    %v1501 = vunpack.c.l.b16 %v578
    %v1502 = vunpack.c.l.b16 %v579
    %v1503 = vunpack.c.h.b16 %v579
    %v1504 = vunpack.c.l.b16 %v580
    %v1505 = vunpack.c.h.b16 %v580
    %v1506 = vunpack.c.l.b16 %v581
    %v1507 = vunpack.c.l.b16 %v582
    %v1508 = vunpack.c.h.b16 %v582
    %v1509 = vunpack.c.l.b16 %v583
    %v1510 = vunpack.c.h.b16 %v583
    %v1511 = vunpack.c.l.b16 %v584
    %v1512 = vunpack.c.l.b16 %v585
    %v1513 = vunpack.c.h.b16 %v585
    %v1514 = vunpack.c.l.b16 %v586
    %v1515 = vunpack.c.h.b16 %v586
    %v1516 = vunpack.c.l.b16 %v587
    %v1517 = vunpack.c.l.b16 %v588
    %v1518 = vunpack.c.h.b16 %v588
    %v1519 = vunpack.c.l.b16 %v589
    %v1520 = vunpack.c.h.b16 %v589
    %v1521 = vunpack.c.l.b16 %v590
    %v1522 = vunpack.c.l.b16 %v591
    %v1523 = vunpack.c.h.b16 %v591
    %v1524 = vunpack.c.l.b16 %v592
    %v1525 = vunpack.c.h.b16 %v592
    %v1526 = vunpack.c.l.b16 %v593
    %v1527 = vunpack.c.l.b16 %v594
    %v1528 = vunpack.c.h.b16 %v594
    %v1529 = vunpack.c.l.b16 %v595
    %v1530 = vunpack.c.h.b16 %v595
    %v1531 = vunpack.c.l.b16 %v596
    %v1532 = vunpack.c.l.b16 %v597
    %v1533 = vunpack.c.h.b16 %v597
    %v1534 = vunpack.c.l.b16 %v598
    %v1535 = vunpack.c.h.b16 %v598
    %v1536 = vunpack.c.l.b16 %v599
    %v1537 = vunpack.c.l.b16 %v600
    %v1538 = vunpack.c.h.b16 %v600
    %v1539 = vunpack.c.l.b16 %v601
    %v1540 = vunpack.c.h.b16 %v601
    %v1541 = vunpack.c.l.b16 %v602
    %v1542 = vunpack.c.l.b16 %v603
    %v1543 = vunpack.c.h.b16 %v603
    %v1544 = vunpack.c.l.b16 %v604
    %v1545 = vunpack.c.h.b16 %v604
    %v1546 = vunpack.c.l.b16 %v605
    %v1547 = vunpack.c.l.b16 %v606
    %v1548 = vunpack.c.h.b16 %v606
    %v1549 = vunpack.c.l.b16 %v607
    %v1550 = vunpack.c.h.b16 %v607
    %v1551 = vunpack.c.l.b16 %v608
    %v1552 = vpack.c.b16 %v1477, %v1472
    %v1553 = vpack.c.b16 %v1478, %v1473
    %v1554 = vpack.c.b16 %v1479, %v1474
    %v1555 = vpack.c.b16 %v1480, %v1475
    %v1556 = vpack.c.b16 %v1481, %v1476
    %v1557 = vpack.c.b16 %v1487, %v1482
    %v1558 = vpack.c.b16 %v1488, %v1483
    %v1559 = vpack.c.b16 %v1489, %v1484
    %v1560 = vpack.c.b16 %v1490, %v1485
    %v1561 = vpack.c.b16 %v1491, %v1486
    %v1562 = vpack.c.b16 %v1497, %v1492
    %v1563 = vpack.c.b16 %v1498, %v1493
    %v1564 = vpack.c.b16 %v1499, %v1494
    %v1565 = vpack.c.b16 %v1500, %v1495
    %v1566 = vpack.c.b16 %v1501, %v1496
    %v1567 = vpack.c.b16 %v1507, %v1502
    %v1568 = vpack.c.b16 %v1508, %v1503
    %v1569 = vpack.c.b16 %v1509, %v1504
    %v1570 = vpack.c.b16 %v1510, %v1505
    %v1571 = vpack.c.b16 %v1511, %v1506
    %v1572 = vpack.c.b16 %v1517, %v1512
    %v1573 = vpack.c.b16 %v1518, %v1513
    %v1574 = vpack.c.b16 %v1519, %v1514
    %v1575 = vpack.c.b16 %v1520, %v1515
    %v1576 = vpack.c.b16 %v1521, %v1516
    %v1577 = vpack.c.b16 %v1527, %v1522
    %v1578 = vpack.c.b16 %v1528, %v1523
    %v1579 = vpack.c.b16 %v1529, %v1524
    %v1580 = vpack.c.b16 %v1530, %v1525
    %v1581 = vpack.c.b16 %v1531, %v1526
    %v1582 = vpack.c.b16 %v1537, %v1532
    %v1583 = vpack.c.b16 %v1538, %v1533
    %v1584 = vpack.c.b16 %v1539, %v1534
    %v1585 = vpack.c.b16 %v1540, %v1535
    %v1586 = vpack.c.b16 %v1541, %v1536
    %v1587 = vpack.c.b16 %v1547, %v1542
    %v1588 = vpack.c.b16 %v1548, %v1543
    %v1589 = vpack.c.b16 %v1549, %v1544
    %v1590 = vpack.c.b16 %v1550, %v1545
    %v1591 = vpack.c.b16 %v1551, %v1546
    %1632 = vmatprep.subr.bf16.mxu0 %v1588
    %1633 = vmatpush1.bf16.msra.mxu0 %v1587
    %1634 = vmatprep.subr.bf16.mxu0 %v1583
    %1635 = vmatpush1.bf16.msra.mxu0 %v1582
    %1636 = vmatprep.subr.bf16.mxu0 %v1578
    %1637 = vmatpush1.bf16.msra.mxu0 %v1577
    %1638 = vmatprep.subr.bf16.mxu0 %v1573
    %1639 = vmatpush1.bf16.msra.mxu0 %v1572
    %1640 = vmatprep.subr.bf16.mxu0 %v1568
    %1641 = vmatpush1.bf16.msra.mxu0 %v1567
    %1642 = vmatprep.subr.bf16.mxu0 %v1563
    %1643 = vmatpush1.bf16.msra.mxu0 %v1562
    %1644 = vmatprep.subr.bf16.mxu0 %v1558
    %1645 = vmatpush1.bf16.msra.mxu0 %v1557
    %1646 = vmatprep.subr.bf16.mxu0 %v1553
    %1647 = vmatpush1.bf16.msra.mxu0 %v1552
    %1648 = vmatprep.subr.bf16.mxu0 0
    %1649 = vmatpush2.bf16.msra.mxu0 0
    %1650 = vmatprep.subr.bf16.mxu0 0
    %1651 = vmatpush2.bf16.msra.mxu0 0
    %1652 = vmatprep.subr.bf16.mxu0 0
    %1653 = vmatpush2.bf16.msra.mxu0 0
    %1654 = vmatprep.subr.bf16.mxu0 0
    %1655 = vmatpush2.bf16.msra.mxu0 0
    %1656 = vmatprep.subr.bf16.mxu0 0
    %1657 = vmatpush2.bf16.msra.mxu0 0
    %1658 = vmatprep.subr.bf16.mxu0 0
    %1659 = vmatpush2.bf16.msra.mxu0 0
    %1660 = vmatprep.subr.bf16.mxu0 0
    %1661 = vmatpush2.bf16.msra.mxu0 0
    %1662 = vmatprep.subr.bf16.mxu0 0
    %1663 = vmatpush2.bf16.msra.mxu0 0
    %1664 = vmatprep.mubr.bf16.mxu0 0
    %1665 = vmatmul.mubr.bf16.gmra.mxu0 %v559
    %v1666 = vpop.f32.mrf.mxu0
    %v1667 = vadd.f32 %v1318, %v1666
    %v1668 = vpop.f32.mrf.mxu0
    %v1669 = vadd.f32 %v1320, %v1668
    %v1670 = vpop.f32.mrf.mxu0
    %v1671 = vpop.f32.mrf.mxu0
    %1672 = vmatprep.mubr.bf16.mxu0 0
    %1673 = vmatmul.mubr.bf16.gmra.mxu0 %v560
    %v1674 = vpop.f32.mrf.mxu0
    %v1675 = vpop.f32.mrf.mxu0
    %v1676 = vpop.f32.mrf.mxu0
    %v1677 = vpop.f32.mrf.mxu0
    %1678 = vdwg.mxu0
    %1679 = vmatprep.subr.bf16.mxu0 %v1590
    %1680 = vmatpush1.bf16.msra.mxu0 %v1589
    %1681 = vmatprep.subr.bf16.mxu0 %v1585
    %1682 = vmatpush1.bf16.msra.mxu0 %v1584
    %1683 = vmatprep.subr.bf16.mxu0 %v1580
    %1684 = vmatpush1.bf16.msra.mxu0 %v1579
    %1685 = vmatprep.subr.bf16.mxu0 %v1575
    %1686 = vmatpush1.bf16.msra.mxu0 %v1574
    %1687 = vmatprep.subr.bf16.mxu0 %v1570
    %1688 = vmatpush1.bf16.msra.mxu0 %v1569
    %1689 = vmatprep.subr.bf16.mxu0 %v1565
    %1690 = vmatpush1.bf16.msra.mxu0 %v1564
    %1691 = vmatprep.subr.bf16.mxu0 %v1560
    %1692 = vmatpush1.bf16.msra.mxu0 %v1559
    %1693 = vmatprep.subr.bf16.mxu0 %v1555
    %1694 = vmatpush1.bf16.msra.mxu0 %v1554
    %1695 = vmatprep.subr.bf16.mxu0 0
    %1696 = vmatpush2.bf16.msra.mxu0 0
    %1697 = vmatprep.subr.bf16.mxu0 0
    %1698 = vmatpush2.bf16.msra.mxu0 0
    %1699 = vmatprep.subr.bf16.mxu0 0
    %1700 = vmatpush2.bf16.msra.mxu0 0
    %1701 = vmatprep.subr.bf16.mxu0 0
    %1702 = vmatpush2.bf16.msra.mxu0 0
    %1703 = vmatprep.subr.bf16.mxu0 0
    %1704 = vmatpush2.bf16.msra.mxu0 0
    %1705 = vmatprep.subr.bf16.mxu0 0
    %1706 = vmatpush2.bf16.msra.mxu0 0
    %1707 = vmatprep.subr.bf16.mxu0 0
    %1708 = vmatpush2.bf16.msra.mxu0 0
    %1709 = vmatprep.subr.bf16.mxu0 0
    %1710 = vmatpush2.bf16.msra.mxu0 0
    %1711 = vmatprep.mubr.bf16.mxu0 0
    %1712 = vmatmul.mubr.bf16.gmra.mxu0 %v559
    %v1713 = vpop.f32.mrf.mxu0
    %v1714 = vadd.f32 %v1365, %v1713
    %v1715 = vpop.f32.mrf.mxu0
    %v1716 = vpop.f32.mrf.mxu0
    %v1717 = vpop.f32.mrf.mxu0
    %v1718 = vadd.f32 %v1369, %v1717
    %1719 = vmatprep.mubr.bf16.mxu0 0
    %1720 = vmatmul.mubr.bf16.gmra.mxu0 %v560
    %v1721 = vpop.f32.mrf.mxu0
    %v1722 = vpop.f32.mrf.mxu0
    %v1723 = vadd.f32 %v1374, %v1722
    %v1724 = vpop.f32.mrf.mxu0
    %v1725 = vpop.f32.mrf.mxu0
    %1726 = vdwg.mxu0
    %1727 = vmatprep.subr.bf16.mxu0 0
    %1728 = vmatpush1.bf16.msra.mxu0 %v1591
    %1729 = vmatprep.subr.bf16.mxu0 0
    %1730 = vmatpush1.bf16.msra.mxu0 %v1586
    %1731 = vmatprep.subr.bf16.mxu0 0
    %1732 = vmatpush1.bf16.msra.mxu0 %v1581
    %1733 = vmatprep.subr.bf16.mxu0 0
    %1734 = vmatpush1.bf16.msra.mxu0 %v1576
    %1735 = vmatprep.subr.bf16.mxu0 0
    %1736 = vmatpush1.bf16.msra.mxu0 %v1571
    %1737 = vmatprep.subr.bf16.mxu0 0
    %1738 = vmatpush1.bf16.msra.mxu0 %v1566
    %1739 = vmatprep.subr.bf16.mxu0 0
    %1740 = vmatpush1.bf16.msra.mxu0 %v1561
    %1741 = vmatprep.subr.bf16.mxu0 0
    %1742 = vmatpush1.bf16.msra.mxu0 %v1556
    %1743 = vmatprep.subr.bf16.mxu0 0
    %1744 = vmatpush2.bf16.msra.mxu0 0
    %1745 = vmatprep.subr.bf16.mxu0 0
    %1746 = vmatpush2.bf16.msra.mxu0 0
    %1747 = vmatprep.subr.bf16.mxu0 0
    %1748 = vmatpush2.bf16.msra.mxu0 0
    %1749 = vmatprep.subr.bf16.mxu0 0
    %1750 = vmatpush2.bf16.msra.mxu0 0
    %1751 = vmatprep.subr.bf16.mxu0 0
    %1752 = vmatpush2.bf16.msra.mxu0 0
    %1753 = vmatprep.subr.bf16.mxu0 0
    %1754 = vmatpush2.bf16.msra.mxu0 0
    %1755 = vmatprep.subr.bf16.mxu0 0
    %1756 = vmatpush2.bf16.msra.mxu0 0
    %1757 = vmatprep.subr.bf16.mxu0 0
    %1758 = vmatpush2.bf16.msra.mxu0 0
    %1759 = vmatprep.mubr.bf16.mxu0 0
    %1760 = vmatmul.mubr.bf16.gmra.mxu0 %v559
    %v1761 = vpop.f32.mrf.mxu0
    %v1762 = vpop.f32.mrf.mxu0
    %v1763 = vpop.f32.mrf.mxu0
    %v1764 = vpop.f32.mrf.mxu0
    %1765 = vmatprep.mubr.bf16.mxu0 0
    %1766 = vmatmul.mubr.bf16.gmra.mxu0 %v560
    %v1767 = vpop.f32.mrf.mxu0
    %v1768 = vpop.f32.mrf.mxu0
    %v1769 = vpop.f32.mrf.mxu0
    %v1770 = vadd.f32 %v1421, %v1769
    %v1771 = vpop.f32.mrf.mxu0
    %1772 = vdwg.mxu0
    %v1773 = vld [vmem:[%s4] sm:$0x1f]
    %v1775 = vlaneseq
    %v1776 = vshrl.u32 %v1775, 7
    %v1777 = vsub.s32 0, %v1776
    %v1778 = vrot.slane %v1773, %v1777
    %v1779 = vlaneseq
    %v1780 = vshrl.u32 %v1779, 7
    %v1781 = vsub.s32 1, %v1780
    %v1782 = vrot.slane %v1773, %v1781
    %v1783 = vlaneseq
    %v1784 = vshrl.u32 %v1783, 7
    %v1785 = vsub.s32 2, %v1784
    %v1786 = vrot.slane %v1773, %v1785
    %v1787 = vlaneseq
    %v1788 = vshrl.u32 %v1787, 7
    %v1789 = vsub.s32 3, %v1788
    %v1790 = vrot.slane %v1773, %v1789
    %v1791 = vlaneseq
    %v1792 = vshrl.u32 %v1791, 7
    %v1793 = vsub.s32 4, %v1792
    %v1794 = vrot.slane %v1773, %v1793
    %v1800 = vadd.f32 %v1667, %v1778
    %v1801 = vadd.f32 %v1669, %v1782
    %v1802 = vadd.f32 %v1714, %v1786
    %v1803 = vadd.f32 %v1718, %v1790
    %v1804 = vadd.f32 %v1723, %v1790
    %v1805 = vadd.f32 %v1770, %v1794
    %v1806 = vsub.f32 0.0, %v1800
    %v1807 = vsub.f32 0.0, %v1801
    %v1808 = vsub.f32 0.0, %v1802
    %v1809 = vsub.f32 0.0, %v1803
    %v1810 = vsub.f32 0.0, %v1804
    %v1811 = vsub.f32 0.0, %v1805
    %v1812 = vmul.f32 %v1806, 1.442695
    %v1813 = vpow.pop %v1812
    %v1814 = vmul.f32 %v1807, 1.442695
    %v1815 = vpow.pop %v1814
    %v1816 = vmul.f32 %v1808, 1.442695
    %v1817 = vpow.pop %v1816
    %v1818 = vmul.f32 %v1809, 1.442695
    %v1819 = vpow.pop %v1818
    %v1820 = vmul.f32 %v1810, 1.442695
    %v1821 = vpow.pop %v1820
    %v1822 = vmul.f32 %v1811, 1.442695
    %v1823 = vpow.pop %v1822
    %v1824 = vadd.f32 %v1813, 1.0
    %v1825 = vadd.f32 %v1815, 1.0
    %v1826 = vadd.f32 %v1817, 1.0
    %v1827 = vadd.f32 %v1819, 1.0
    %v1828 = vadd.f32 %v1821, 1.0
    %v1829 = vadd.f32 %v1823, 1.0
    %v1830 = vrcp.pop %v1824
    %v1831 = vrcp.pop %v1825
    %v1832 = vrcp.pop %v1826
    %v1833 = vrcp.pop %v1827
    %v1834 = vrcp.pop %v1828
    %v1835 = vrcp.pop %v1829
    %v1836 = vmul.f32 %v1800, %v1830
    %v1837 = vmul.f32 %v1801, %v1831
    %v1838 = vmul.f32 %v1802, %v1832
    %v1839 = vmul.f32 %v1803, %v1833
    %v1840 = vmul.f32 %v1804, %v1834
    %v1841 = vmul.f32 %v1805, %v1835
    %v1842 = vpack.c.bf16 %v1836, %v1836
    %v1843 = vpack.c.bf16 %v1837, %v1837
    %v1844 = vpack.c.bf16 %v1838, %v1838
    %v1845 = vpack.c.bf16 %v1840, %v1839
    %v1846 = vpack.c.bf16 %v1841, %v1841
    %s1847 = smul.u32 4, 48
    %s1848 = smul.u32 %s1847, 3
    %s1849 = sshll.u32 %s1848, 4
    %1850 = dma.done [#allocation6], %s1849
    %s1851 = smul.u32 4, 16
    %s1852 = smul.u32 %s1851, 1
    %s1853 = sshll.u32 %s1852, 4
    %1854 = dma.done %s71, %s1853
    %s1855 = sshll.u32 %s1852, 4
    %1856 = dma.done %s83, %s1855
    %v1857 = vld [vmem:[#allocation3] sm:$0xff]
    %v1858 = vld [vmem:[#allocation3 + $0x8] sm:$0xf]
    %v1859 = vld [vmem:[#allocation3 + $0xc] sm:$0xff]
    %v1860 = vld [vmem:[#allocation3 + $0x14] sm:$0xf]
    %v1861 = vld [vmem:[#allocation3 + $0x18] sm:$0xff]
    %v1862 = vld [vmem:[#allocation3 + $0x20] sm:$0xf]
    %v1863 = vld [vmem:[#allocation3 + $0x24] sm:$0xff]
    %v1864 = vld [vmem:[#allocation3 + $0x2c] sm:$0xf]
    %v1865 = vld [vmem:[#allocation3 + $0x30] sm:$0xff]
    %v1866 = vld [vmem:[#allocation3 + $0x38] sm:$0xf]
    %v1867 = vld [vmem:[#allocation3 + $0x3c] sm:$0xff]
    %v1868 = vld [vmem:[#allocation3 + $0x44] sm:$0xf]
    %v1869 = vld [vmem:[#allocation3 + $0x48] sm:$0xff]
    %v1870 = vld [vmem:[#allocation3 + $0x50] sm:$0xf]
    %v1871 = vld [vmem:[#allocation3 + $0x54] sm:$0xff]
    %v1872 = vld [vmem:[#allocation3 + $0x5c] sm:$0xf]
    %v1873 = vld [vmem:[#allocation3 + $0x60] sm:$0xff]
    %v1874 = vld [vmem:[#allocation3 + $0x68] sm:$0xf]
    %v1875 = vld [vmem:[#allocation3 + $0x6c] sm:$0xff]
    %v1876 = vld [vmem:[#allocation3 + $0x74] sm:$0xf]
    %v1877 = vld [vmem:[#allocation3 + $0x78] sm:$0xff]
    %v1878 = vld [vmem:[#allocation3 + $0x80] sm:$0xf]
    %v1879 = vld [vmem:[#allocation3 + $0x84] sm:$0xff]
    %v1880 = vld [vmem:[#allocation3 + $0x8c] sm:$0xf]
    %v1881 = vld [vmem:[#allocation3 + $0x90] sm:$0xff]
    %v1882 = vld [vmem:[#allocation3 + $0x98] sm:$0xf]
    %v1883 = vld [vmem:[#allocation3 + $0x9c] sm:$0xff]
    %v1884 = vld [vmem:[#allocation3 + $0xa4] sm:$0xf]
    %v1885 = vld [vmem:[#allocation3 + $0xa8] sm:$0xff]
    %v1886 = vld [vmem:[#allocation3 + $0xb0] sm:$0xf]
    %v1887 = vld [vmem:[#allocation3 + $0xb4] sm:$0xff]
    %v1888 = vld [vmem:[#allocation3 + $0xbc] sm:$0xf]
    %v1889 = vld [vmem:[#allocation3 + $0xc0] sm:$0xff]
    %v1890 = vld [vmem:[#allocation3 + $0xc8] sm:$0xf]
    %v1891 = vld [vmem:[#allocation3 + $0xcc] sm:$0xff]
    %v1892 = vld [vmem:[#allocation3 + $0xd4] sm:$0xf]
    %v1893 = vld [vmem:[#allocation3 + $0xd8] sm:$0xff]
    %v1894 = vld [vmem:[#allocation3 + $0xe0] sm:$0xf]
    %v1895 = vld [vmem:[#allocation3 + $0xe4] sm:$0xff]
    %v1896 = vld [vmem:[#allocation3 + $0xec] sm:$0xf]
    %v1897 = vld [vmem:[#allocation3 + $0xf0] sm:$0xff]
    %v1898 = vld [vmem:[#allocation3 + $0xf8] sm:$0xf]
    %v1899 = vld [vmem:[#allocation3 + $0xfc] sm:$0xff]
    %v1900 = vld [vmem:[#allocation3 + $0x104] sm:$0xf]
    %v1901 = vld [vmem:[#allocation3 + $0x108] sm:$0xff]
    %v1902 = vld [vmem:[#allocation3 + $0x110] sm:$0xf]
    %v1903 = vld [vmem:[#allocation3 + $0x114] sm:$0xff]
    %v1904 = vld [vmem:[#allocation3 + $0x11c] sm:$0xf]
    %v1905 = vld [vmem:[#allocation3 + $0x120] sm:$0xff]
    %v1906 = vld [vmem:[#allocation3 + $0x128] sm:$0xf]
    %v1907 = vld [vmem:[#allocation3 + $0x12c] sm:$0xff]
    %v1908 = vld [vmem:[#allocation3 + $0x134] sm:$0xf]
    %v1909 = vld [vmem:[#allocation3 + $0x138] sm:$0xff]
    %v1910 = vld [vmem:[#allocation3 + $0x140] sm:$0xf]
    %v1911 = vld [vmem:[#allocation3 + $0x144] sm:$0xff]
    %v1912 = vld [vmem:[#allocation3 + $0x14c] sm:$0xf]
    %v1913 = vld [vmem:[#allocation3 + $0x150] sm:$0xff]
    %v1914 = vld [vmem:[#allocation3 + $0x158] sm:$0xf]
    %v1915 = vld [vmem:[#allocation3 + $0x15c] sm:$0xff]
    %v1916 = vld [vmem:[#allocation3 + $0x164] sm:$0xf]
    %v1917 = vld [vmem:[#allocation3 + $0x168] sm:$0xff]
    %v1918 = vld [vmem:[#allocation3 + $0x170] sm:$0xf]
    %v1919 = vld [vmem:[#allocation3 + $0x174] sm:$0xff]
    %v1920 = vld [vmem:[#allocation3 + $0x17c] sm:$0xf]
    %v1921 = vld [vmem:[#allocation3 + $0x180] sm:$0xff]
    %v1922 = vld [vmem:[#allocation3 + $0x188] sm:$0xf]
    %v1923 = vld [vmem:[#allocation3 + $0x18c] sm:$0xff]
    %v1924 = vld [vmem:[#allocation3 + $0x194] sm:$0xf]
    %v1925 = vld [vmem:[#allocation3 + $0x198] sm:$0xff]
    %v1926 = vld [vmem:[#allocation3 + $0x1a0] sm:$0xf]
    %v1927 = vld [vmem:[#allocation3 + $0x1a4] sm:$0xff]
    %v1928 = vld [vmem:[#allocation3 + $0x1ac] sm:$0xf]
    %v1929 = vld [vmem:[#allocation3 + $0x1b0] sm:$0xff]
    %v1930 = vld [vmem:[#allocation3 + $0x1b8] sm:$0xf]
    %v1931 = vld [vmem:[#allocation3 + $0x1bc] sm:$0xff]
    %v1932 = vld [vmem:[#allocation3 + $0x1c4] sm:$0xf]
    %v1933 = vld [vmem:[#allocation3 + $0x1c8] sm:$0xff]
    %v1934 = vld [vmem:[#allocation3 + $0x1d0] sm:$0xf]
    %v1935 = vld [vmem:[#allocation3 + $0x1d4] sm:$0xff]
    %v1936 = vld [vmem:[#allocation3 + $0x1dc] sm:$0xf]
    %v1937 = vld [vmem:[#allocation3 + $0x1e0] sm:$0xff]
    %v1938 = vld [vmem:[#allocation3 + $0x1e8] sm:$0xf]
    %v1939 = vld [vmem:[#allocation3 + $0x1ec] sm:$0xff]
    %v1940 = vld [vmem:[#allocation3 + $0x1f4] sm:$0xf]
    %v1941 = vld [vmem:[#allocation3 + $0x1f8] sm:$0xff]
    %v1942 = vld [vmem:[#allocation3 + $0x200] sm:$0xf]
    %v1943 = vld [vmem:[#allocation3 + $0x204] sm:$0xff]
    %v1944 = vld [vmem:[#allocation3 + $0x20c] sm:$0xf]
    %v1945 = vld [vmem:[#allocation3 + $0x210] sm:$0xff]
    %v1946 = vld [vmem:[#allocation3 + $0x218] sm:$0xf]
    %v1947 = vld [vmem:[#allocation3 + $0x21c] sm:$0xff]
    %v1948 = vld [vmem:[#allocation3 + $0x224] sm:$0xf]
    %v1949 = vld [vmem:[#allocation3 + $0x228] sm:$0xff]
    %v1950 = vld [vmem:[#allocation3 + $0x230] sm:$0xf]
    %v1951 = vld [vmem:[#allocation3 + $0x234] sm:$0xff]
    %v1952 = vld [vmem:[#allocation3 + $0x23c] sm:$0xf]
    %v1953 = vld [vmem:[%s6] sm:$0x7]
    %v1955 = vlaneseq
    %v1956 = vshrl.u32 %v1955, 7
    %v1957 = vsub.s32 0, %v1956
    %v1958 = vrot.slane %v1953, %v1957
    %v1959 = vlaneseq
    %v1960 = vshrl.u32 %v1959, 7
    %v1961 = vsub.s32 1, %v1960
    %v1962 = vrot.slane %v1953, %v1961
    %v1963 = vlaneseq
    %v1964 = vshrl.u32 %v1963, 7
    %v1965 = vsub.s32 2, %v1964
    %v1966 = vrot.slane %v1953, %v1965
    %v2066 = vunpack.c.l.b16 %v1857
    %v2067 = vunpack.c.h.b16 %v1857
    %v2068 = vunpack.c.l.b16 %v1858
    %v2069 = vunpack.c.l.b16 %v1859
    %v2070 = vunpack.c.h.b16 %v1859
    %v2071 = vunpack.c.l.b16 %v1860
    %v2072 = vunpack.c.l.b16 %v1861
    %v2073 = vunpack.c.h.b16 %v1861
    %v2074 = vunpack.c.l.b16 %v1862
    %v2075 = vunpack.c.l.b16 %v1863
    %v2076 = vunpack.c.h.b16 %v1863
    %v2077 = vunpack.c.l.b16 %v1864
    %v2078 = vunpack.c.l.b16 %v1865
    %v2079 = vunpack.c.h.b16 %v1865
    %v2080 = vunpack.c.l.b16 %v1866
    %v2081 = vunpack.c.l.b16 %v1867
    %v2082 = vunpack.c.h.b16 %v1867
    %v2083 = vunpack.c.l.b16 %v1868
    %v2084 = vunpack.c.l.b16 %v1869
    %v2085 = vunpack.c.h.b16 %v1869
    %v2086 = vunpack.c.l.b16 %v1870
    %v2087 = vunpack.c.l.b16 %v1871
    %v2088 = vunpack.c.h.b16 %v1871
    %v2089 = vunpack.c.l.b16 %v1872
    %v2090 = vunpack.c.l.b16 %v1873
    %v2091 = vunpack.c.h.b16 %v1873
    %v2092 = vunpack.c.l.b16 %v1874
    %v2093 = vunpack.c.l.b16 %v1875
    %v2094 = vunpack.c.h.b16 %v1875
    %v2095 = vunpack.c.l.b16 %v1876
    %v2096 = vunpack.c.l.b16 %v1877
    %v2097 = vunpack.c.h.b16 %v1877
    %v2098 = vunpack.c.l.b16 %v1878
    %v2099 = vunpack.c.l.b16 %v1879
    %v2100 = vunpack.c.h.b16 %v1879
    %v2101 = vunpack.c.l.b16 %v1880
    %v2102 = vunpack.c.l.b16 %v1881
    %v2103 = vunpack.c.h.b16 %v1881
    %v2104 = vunpack.c.l.b16 %v1882
    %v2105 = vunpack.c.l.b16 %v1883
    %v2106 = vunpack.c.h.b16 %v1883
    %v2107 = vunpack.c.l.b16 %v1884
    %v2108 = vunpack.c.l.b16 %v1885
    %v2109 = vunpack.c.h.b16 %v1885
    %v2110 = vunpack.c.l.b16 %v1886
    %v2111 = vunpack.c.l.b16 %v1887
    %v2112 = vunpack.c.h.b16 %v1887
    %v2113 = vunpack.c.l.b16 %v1888
    %v2114 = vunpack.c.l.b16 %v1889
    %v2115 = vunpack.c.h.b16 %v1889
    %v2116 = vunpack.c.l.b16 %v1890
    %v2117 = vunpack.c.l.b16 %v1891
    %v2118 = vunpack.c.h.b16 %v1891
    %v2119 = vunpack.c.l.b16 %v1892
    %v2120 = vunpack.c.l.b16 %v1893
    %v2121 = vunpack.c.h.b16 %v1893
    %v2122 = vunpack.c.l.b16 %v1894
    %v2123 = vunpack.c.l.b16 %v1895
    %v2124 = vunpack.c.h.b16 %v1895
    %v2125 = vunpack.c.l.b16 %v1896
    %v2126 = vunpack.c.l.b16 %v1897
    %v2127 = vunpack.c.h.b16 %v1897
    %v2128 = vunpack.c.l.b16 %v1898
    %v2129 = vunpack.c.l.b16 %v1899
    %v2130 = vunpack.c.h.b16 %v1899
    %v2131 = vunpack.c.l.b16 %v1900
    %v2132 = vunpack.c.l.b16 %v1901
    %v2133 = vunpack.c.h.b16 %v1901
    %v2134 = vunpack.c.l.b16 %v1902
    %v2135 = vunpack.c.l.b16 %v1903
    %v2136 = vunpack.c.h.b16 %v1903
    %v2137 = vunpack.c.l.b16 %v1904
    %v2138 = vunpack.c.l.b16 %v1905
    %v2139 = vunpack.c.h.b16 %v1905
    %v2140 = vunpack.c.l.b16 %v1906
    %v2141 = vunpack.c.l.b16 %v1907
    %v2142 = vunpack.c.h.b16 %v1907
    %v2143 = vunpack.c.l.b16 %v1908
    %v2144 = vunpack.c.l.b16 %v1909
    %v2145 = vunpack.c.h.b16 %v1909
    %v2146 = vunpack.c.l.b16 %v1910
    %v2147 = vunpack.c.l.b16 %v1911
    %v2148 = vunpack.c.h.b16 %v1911
    %v2149 = vunpack.c.l.b16 %v1912
    %v2150 = vunpack.c.l.b16 %v1913
    %v2151 = vunpack.c.h.b16 %v1913
    %v2152 = vunpack.c.l.b16 %v1914
    %v2153 = vunpack.c.l.b16 %v1915
    %v2154 = vunpack.c.h.b16 %v1915
    %v2155 = vunpack.c.l.b16 %v1916
    %v2156 = vunpack.c.l.b16 %v1917
    %v2157 = vunpack.c.h.b16 %v1917
    %v2158 = vunpack.c.l.b16 %v1918
    %v2159 = vunpack.c.l.b16 %v1919
    %v2160 = vunpack.c.h.b16 %v1919
    %v2161 = vunpack.c.l.b16 %v1920
    %v2162 = vunpack.c.l.b16 %v1921
    %v2163 = vunpack.c.h.b16 %v1921
    %v2164 = vunpack.c.l.b16 %v1922
    %v2165 = vunpack.c.l.b16 %v1923
    %v2166 = vunpack.c.h.b16 %v1923
    %v2167 = vunpack.c.l.b16 %v1924
    %v2168 = vunpack.c.l.b16 %v1925
    %v2169 = vunpack.c.h.b16 %v1925
    %v2170 = vunpack.c.l.b16 %v1926
    %v2171 = vunpack.c.l.b16 %v1927
    %v2172 = vunpack.c.h.b16 %v1927
    %v2173 = vunpack.c.l.b16 %v1928
    %v2174 = vunpack.c.l.b16 %v1929
    %v2175 = vunpack.c.h.b16 %v1929
    %v2176 = vunpack.c.l.b16 %v1930
    %v2177 = vunpack.c.l.b16 %v1931
    %v2178 = vunpack.c.h.b16 %v1931
    %v2179 = vunpack.c.l.b16 %v1932
    %v2180 = vunpack.c.l.b16 %v1933
    %v2181 = vunpack.c.h.b16 %v1933
    %v2182 = vunpack.c.l.b16 %v1934
    %v2183 = vunpack.c.l.b16 %v1935
    %v2184 = vunpack.c.h.b16 %v1935
    %v2185 = vunpack.c.l.b16 %v1936
    %v2186 = vunpack.c.l.b16 %v1937
    %v2187 = vunpack.c.h.b16 %v1937
    %v2188 = vunpack.c.l.b16 %v1938
    %v2189 = vunpack.c.l.b16 %v1939
    %v2190 = vunpack.c.h.b16 %v1939
    %v2191 = vunpack.c.l.b16 %v1940
    %v2192 = vunpack.c.l.b16 %v1941
    %v2193 = vunpack.c.h.b16 %v1941
    %v2194 = vunpack.c.l.b16 %v1942
    %v2195 = vunpack.c.l.b16 %v1943
    %v2196 = vunpack.c.h.b16 %v1943
    %v2197 = vunpack.c.l.b16 %v1944
    %v2198 = vunpack.c.l.b16 %v1945
    %v2199 = vunpack.c.h.b16 %v1945
    %v2200 = vunpack.c.l.b16 %v1946
    %v2201 = vunpack.c.l.b16 %v1947
    %v2202 = vunpack.c.h.b16 %v1947
    %v2203 = vunpack.c.l.b16 %v1948
    %v2204 = vunpack.c.l.b16 %v1949
    %v2205 = vunpack.c.h.b16 %v1949
    %v2206 = vunpack.c.l.b16 %v1950
    %v2207 = vunpack.c.l.b16 %v1951
    %v2208 = vunpack.c.h.b16 %v1951
    %v2209 = vunpack.c.l.b16 %v1952
    %v2210 = vpack.c.b16 %v2069, %v2066
    %v2211 = vpack.c.b16 %v2070, %v2067
    %v2212 = vpack.c.b16 %v2071, %v2068
    %v2213 = vpack.c.b16 %v2075, %v2072
    %v2214 = vpack.c.b16 %v2076, %v2073
    %v2215 = vpack.c.b16 %v2077, %v2074
    %v2216 = vpack.c.b16 %v2081, %v2078
    %v2217 = vpack.c.b16 %v2082, %v2079
    %v2218 = vpack.c.b16 %v2083, %v2080
    %v2219 = vpack.c.b16 %v2087, %v2084
    %v2220 = vpack.c.b16 %v2088, %v2085
    %v2221 = vpack.c.b16 %v2089, %v2086
    %v2222 = vpack.c.b16 %v2093, %v2090
    %v2223 = vpack.c.b16 %v2094, %v2091
    %v2224 = vpack.c.b16 %v2095, %v2092
    %v2225 = vpack.c.b16 %v2099, %v2096
    %v2226 = vpack.c.b16 %v2100, %v2097
    %v2227 = vpack.c.b16 %v2101, %v2098
    %v2228 = vpack.c.b16 %v2105, %v2102
    %v2229 = vpack.c.b16 %v2106, %v2103
    %v2230 = vpack.c.b16 %v2107, %v2104
    %v2231 = vpack.c.b16 %v2111, %v2108
    %v2232 = vpack.c.b16 %v2112, %v2109
    %v2233 = vpack.c.b16 %v2113, %v2110
    %v2234 = vpack.c.b16 %v2117, %v2114
    %v2235 = vpack.c.b16 %v2118, %v2115
    %v2236 = vpack.c.b16 %v2119, %v2116
    %v2237 = vpack.c.b16 %v2123, %v2120
    %v2238 = vpack.c.b16 %v2124, %v2121
    %v2239 = vpack.c.b16 %v2125, %v2122
    %v2240 = vpack.c.b16 %v2129, %v2126
    %v2241 = vpack.c.b16 %v2130, %v2127
    %v2242 = vpack.c.b16 %v2131, %v2128
    %v2243 = vpack.c.b16 %v2135, %v2132
    %v2244 = vpack.c.b16 %v2136, %v2133
    %v2245 = vpack.c.b16 %v2137, %v2134
    %v2246 = vpack.c.b16 %v2141, %v2138
    %v2247 = vpack.c.b16 %v2142, %v2139
    %v2248 = vpack.c.b16 %v2143, %v2140
    %v2249 = vpack.c.b16 %v2147, %v2144
    %v2250 = vpack.c.b16 %v2148, %v2145
    %v2251 = vpack.c.b16 %v2149, %v2146
    %v2252 = vpack.c.b16 %v2153, %v2150
    %v2253 = vpack.c.b16 %v2154, %v2151
    %v2254 = vpack.c.b16 %v2155, %v2152
    %v2255 = vpack.c.b16 %v2159, %v2156
    %v2256 = vpack.c.b16 %v2160, %v2157
    %v2257 = vpack.c.b16 %v2161, %v2158
    %v2258 = vpack.c.b16 %v2165, %v2162
    %v2259 = vpack.c.b16 %v2166, %v2163
    %v2260 = vpack.c.b16 %v2167, %v2164
    %v2261 = vpack.c.b16 %v2171, %v2168
    %v2262 = vpack.c.b16 %v2172, %v2169
    %v2263 = vpack.c.b16 %v2173, %v2170
    %v2264 = vpack.c.b16 %v2177, %v2174
    %v2265 = vpack.c.b16 %v2178, %v2175
    %v2266 = vpack.c.b16 %v2179, %v2176
    %v2267 = vpack.c.b16 %v2183, %v2180
    %v2268 = vpack.c.b16 %v2184, %v2181
    %v2269 = vpack.c.b16 %v2185, %v2182
    %v2270 = vpack.c.b16 %v2189, %v2186
    %v2271 = vpack.c.b16 %v2190, %v2187
    %v2272 = vpack.c.b16 %v2191, %v2188
    %v2273 = vpack.c.b16 %v2195, %v2192
    %v2274 = vpack.c.b16 %v2196, %v2193
    %v2275 = vpack.c.b16 %v2197, %v2194
    %v2276 = vpack.c.b16 %v2201, %v2198
    %v2277 = vpack.c.b16 %v2202, %v2199
    %v2278 = vpack.c.b16 %v2203, %v2200
    %v2279 = vpack.c.b16 %v2207, %v2204
    %v2280 = vpack.c.b16 %v2208, %v2205
    %v2281 = vpack.c.b16 %v2209, %v2206
    %2354 = vmatprep.subr.bf16.mxu0 %v2232
    %2355 = vmatpush1.bf16.msra.mxu0 %v2231
    %2356 = vmatprep.subr.bf16.mxu0 %v2229
    %2357 = vmatpush1.bf16.msra.mxu0 %v2228
    %2358 = vmatprep.subr.bf16.mxu0 %v2226
    %2359 = vmatpush1.bf16.msra.mxu0 %v2225
    %2360 = vmatprep.subr.bf16.mxu0 %v2223
    %2361 = vmatpush1.bf16.msra.mxu0 %v2222
    %2362 = vmatprep.subr.bf16.mxu0 %v2220
    %2363 = vmatpush1.bf16.msra.mxu0 %v2219
    %2364 = vmatprep.subr.bf16.mxu0 %v2217
    %2365 = vmatpush1.bf16.msra.mxu0 %v2216
    %2366 = vmatprep.subr.bf16.mxu0 %v2214
    %2367 = vmatpush1.bf16.msra.mxu0 %v2213
    %2368 = vmatprep.subr.bf16.mxu0 %v2211
    %2369 = vmatpush1.bf16.msra.mxu0 %v2210
    %2370 = vmatprep.subr.bf16.mxu0 %v2256
    %2371 = vmatpush2.bf16.msra.mxu0 %v2255
    %2372 = vmatprep.subr.bf16.mxu0 %v2253
    %2373 = vmatpush2.bf16.msra.mxu0 %v2252
    %2374 = vmatprep.subr.bf16.mxu0 %v2250
    %2375 = vmatpush2.bf16.msra.mxu0 %v2249
    %2376 = vmatprep.subr.bf16.mxu0 %v2247
    %2377 = vmatpush2.bf16.msra.mxu0 %v2246
    %2378 = vmatprep.subr.bf16.mxu0 %v2244
    %2379 = vmatpush2.bf16.msra.mxu0 %v2243
    %2380 = vmatprep.subr.bf16.mxu0 %v2241
    %2381 = vmatpush2.bf16.msra.mxu0 %v2240
    %2382 = vmatprep.subr.bf16.mxu0 %v2238
    %2383 = vmatpush2.bf16.msra.mxu0 %v2237
    %2384 = vmatprep.subr.bf16.mxu0 %v2235
    %2385 = vmatpush2.bf16.msra.mxu0 %v2234
    %2386 = vmatprep.mubr.bf16.mxu0 %v1843
    %2387 = vmatmul.mubr.bf16.gmra.mxu0 %v1842
    %v2388 = vpop.f32.mrf.mxu0
    %v2389 = vadd.f32 %v1958, %v2388
    %v2390 = vpop.f32.mrf.mxu0
    %v2391 = vadd.f32 %v1962, %v2390
    %v2392 = vpop.f32.mrf.mxu0
    %v2393 = vpop.f32.mrf.mxu0
    %2394 = vdwg.mxu0
    %2395 = vmatprep.subr.bf16.mxu0 %v2280
    %2396 = vmatpush1.bf16.msra.mxu0 %v2279
    %2397 = vmatprep.subr.bf16.mxu0 %v2277
    %2398 = vmatpush1.bf16.msra.mxu0 %v2276
    %2399 = vmatprep.subr.bf16.mxu0 %v2274
    %2400 = vmatpush1.bf16.msra.mxu0 %v2273
    %2401 = vmatprep.subr.bf16.mxu0 %v2271
    %2402 = vmatpush1.bf16.msra.mxu0 %v2270
    %2403 = vmatprep.subr.bf16.mxu0 %v2268
    %2404 = vmatpush1.bf16.msra.mxu0 %v2267
    %2405 = vmatprep.subr.bf16.mxu0 %v2265
    %2406 = vmatpush1.bf16.msra.mxu0 %v2264
    %2407 = vmatprep.subr.bf16.mxu0 %v2262
    %2408 = vmatpush1.bf16.msra.mxu0 %v2261
    %2409 = vmatprep.subr.bf16.mxu0 %v2259
    %2410 = vmatpush1.bf16.msra.mxu0 %v2258
    %2411 = vmatprep.subr.bf16.mxu0 0
    %2412 = vmatpush2.bf16.msra.mxu0 0
    %2413 = vmatprep.subr.bf16.mxu0 0
    %2414 = vmatpush2.bf16.msra.mxu0 0
    %2415 = vmatprep.subr.bf16.mxu0 0
    %2416 = vmatpush2.bf16.msra.mxu0 0
    %2417 = vmatprep.subr.bf16.mxu0 0
    %2418 = vmatpush2.bf16.msra.mxu0 0
    %2419 = vmatprep.subr.bf16.mxu0 0
    %2420 = vmatpush2.bf16.msra.mxu0 0
    %2421 = vmatprep.subr.bf16.mxu0 0
    %2422 = vmatpush2.bf16.msra.mxu0 0
    %2423 = vmatprep.subr.bf16.mxu0 0
    %2424 = vmatpush2.bf16.msra.mxu0 0
    %2425 = vmatprep.subr.bf16.mxu0 0
    %2426 = vmatpush2.bf16.msra.mxu0 0
    %2427 = vmatprep.mubr.bf16.mxu0 0
    %2428 = vmatmul.mubr.bf16.gmra.mxu0 %v1844
    %v2429 = vpop.f32.mrf.mxu0
    %v2430 = vadd.f32 %v2389, %v2429
    %v2431 = vpop.f32.mrf.mxu0
    %v2432 = vadd.f32 %v2391, %v2431
    %v2433 = vpop.f32.mrf.mxu0
    %v2434 = vpop.f32.mrf.mxu0
    %2435 = vdwg.mxu0
    %2436 = vmatprep.subr.bf16.mxu0 0
    %2437 = vmatpush1.bf16.msra.mxu0 %v2233
    %2438 = vmatprep.subr.bf16.mxu0 0
    %2439 = vmatpush1.bf16.msra.mxu0 %v2230
    %2440 = vmatprep.subr.bf16.mxu0 0
    %2441 = vmatpush1.bf16.msra.mxu0 %v2227
    %2442 = vmatprep.subr.bf16.mxu0 0
    %2443 = vmatpush1.bf16.msra.mxu0 %v2224
    %2444 = vmatprep.subr.bf16.mxu0 0
    %2445 = vmatpush1.bf16.msra.mxu0 %v2221
    %2446 = vmatprep.subr.bf16.mxu0 0
    %2447 = vmatpush1.bf16.msra.mxu0 %v2218
    %2448 = vmatprep.subr.bf16.mxu0 0
    %2449 = vmatpush1.bf16.msra.mxu0 %v2215
    %2450 = vmatprep.subr.bf16.mxu0 0
    %2451 = vmatpush1.bf16.msra.mxu0 %v2212
    %2452 = vmatprep.subr.bf16.mxu0 0
    %2453 = vmatpush2.bf16.msra.mxu0 %v2257
    %2454 = vmatprep.subr.bf16.mxu0 0
    %2455 = vmatpush2.bf16.msra.mxu0 %v2254
    %2456 = vmatprep.subr.bf16.mxu0 0
    %2457 = vmatpush2.bf16.msra.mxu0 %v2251
    %2458 = vmatprep.subr.bf16.mxu0 0
    %2459 = vmatpush2.bf16.msra.mxu0 %v2248
    %2460 = vmatprep.subr.bf16.mxu0 0
    %2461 = vmatpush2.bf16.msra.mxu0 %v2245
    %2462 = vmatprep.subr.bf16.mxu0 0
    %2463 = vmatpush2.bf16.msra.mxu0 %v2242
    %2464 = vmatprep.subr.bf16.mxu0 0
    %2465 = vmatpush2.bf16.msra.mxu0 %v2239
    %2466 = vmatprep.subr.bf16.mxu0 0
    %2467 = vmatpush2.bf16.msra.mxu0 %v2236
    %2468 = vmatprep.mubr.bf16.mxu0 %v1843
    %2469 = vmatmul.mubr.bf16.gmra.mxu0 %v1842
    %v2470 = vpop.f32.mrf.mxu0
    %v2471 = vadd.f32 %v1966, %v2470
    %v2472 = vpop.f32.mrf.mxu0
    %v2473 = vpop.f32.mrf.mxu0
    %v2474 = vpop.f32.mrf.mxu0
    %2475 = vdwg.mxu0
    %2476 = vmatprep.subr.bf16.mxu0 0
    %2477 = vmatpush1.bf16.msra.mxu0 %v2281
    %2478 = vmatprep.subr.bf16.mxu0 0
    %2479 = vmatpush1.bf16.msra.mxu0 %v2278
    %2480 = vmatprep.subr.bf16.mxu0 0
    %2481 = vmatpush1.bf16.msra.mxu0 %v2275
    %2482 = vmatprep.subr.bf16.mxu0 0
    %2483 = vmatpush1.bf16.msra.mxu0 %v2272
    %2484 = vmatprep.subr.bf16.mxu0 0
    %2485 = vmatpush1.bf16.msra.mxu0 %v2269
    %2486 = vmatprep.subr.bf16.mxu0 0
    %2487 = vmatpush1.bf16.msra.mxu0 %v2266
    %2488 = vmatprep.subr.bf16.mxu0 0
    %2489 = vmatpush1.bf16.msra.mxu0 %v2263
    %2490 = vmatprep.subr.bf16.mxu0 0
    %2491 = vmatpush1.bf16.msra.mxu0 %v2260
    %2492 = vmatprep.subr.bf16.mxu0 0
    %2493 = vmatpush2.bf16.msra.mxu0 0
    %2494 = vmatprep.subr.bf16.mxu0 0
    %2495 = vmatpush2.bf16.msra.mxu0 0
    %2496 = vmatprep.subr.bf16.mxu0 0
    %2497 = vmatpush2.bf16.msra.mxu0 0
    %2498 = vmatprep.subr.bf16.mxu0 0
    %2499 = vmatpush2.bf16.msra.mxu0 0
    %2500 = vmatprep.subr.bf16.mxu0 0
    %2501 = vmatpush2.bf16.msra.mxu0 0
    %2502 = vmatprep.subr.bf16.mxu0 0
    %2503 = vmatpush2.bf16.msra.mxu0 0
    %2504 = vmatprep.subr.bf16.mxu0 0
    %2505 = vmatpush2.bf16.msra.mxu0 0
    %2506 = vmatprep.subr.bf16.mxu0 0
    %2507 = vmatpush2.bf16.msra.mxu0 0
    %2508 = vmatprep.mubr.bf16.mxu0 0
    %2509 = vmatmul.mubr.bf16.gmra.mxu0 %v1844
    %v2510 = vpop.f32.mrf.mxu0
    %v2511 = vadd.f32 %v2471, %v2510
    %v2512 = vpop.f32.mrf.mxu0
    %v2513 = vpop.f32.mrf.mxu0
    %v2514 = vpop.f32.mrf.mxu0
    %2515 = vdwg.mxu0
    %v2516 = vld [vmem:[#allocation4] sm:$0xf]
    %v2517 = vld [vmem:[#allocation4 + $0x4] sm:$0xf]
    %v2518 = vld [vmem:[#allocation4 + $0x8] sm:$0xf]
    %v2519 = vld [vmem:[#allocation4 + $0xc] sm:$0xf]
    %v2520 = vld [vmem:[#allocation4 + $0x10] sm:$0xf]
    %v2521 = vld [vmem:[#allocation4 + $0x14] sm:$0xf]
    %v2522 = vld [vmem:[#allocation4 + $0x18] sm:$0xf]
    %v2523 = vld [vmem:[#allocation4 + $0x1c] sm:$0xf]
    %v2524 = vld [vmem:[#allocation4 + $0x20] sm:$0xf]
    %v2525 = vld [vmem:[#allocation4 + $0x24] sm:$0xf]
    %v2526 = vld [vmem:[#allocation4 + $0x28] sm:$0xf]
    %v2527 = vld [vmem:[#allocation4 + $0x2c] sm:$0xf]
    %v2528 = vld [vmem:[#allocation4 + $0x30] sm:$0xf]
    %v2529 = vld [vmem:[#allocation4 + $0x34] sm:$0xf]
    %v2530 = vld [vmem:[#allocation4 + $0x38] sm:$0xf]
    %v2531 = vld [vmem:[#allocation4 + $0x3c] sm:$0xf]
    %v2532 = vld [vmem:[%s8] sm:$0x1]
    %v2534 = vlaneseq
    %v2535 = vshrl.u32 %v2534, 7
    %v2536 = vsub.s32 0, %v2535
    %v2537 = vrot.slane %v2532, %v2536
    %v2555 = vunpack.c.l.b16 %v2516
    %v2556 = vunpack.c.l.b16 %v2517
    %v2557 = vunpack.c.l.b16 %v2518
    %v2558 = vunpack.c.l.b16 %v2519
    %v2559 = vunpack.c.l.b16 %v2520
    %v2560 = vunpack.c.l.b16 %v2521
    %v2561 = vunpack.c.l.b16 %v2522
    %v2562 = vunpack.c.l.b16 %v2523
    %v2563 = vunpack.c.l.b16 %v2524
    %v2564 = vunpack.c.l.b16 %v2525
    %v2565 = vunpack.c.l.b16 %v2526
    %v2566 = vunpack.c.l.b16 %v2527
    %v2567 = vunpack.c.l.b16 %v2528
    %v2568 = vunpack.c.l.b16 %v2529
    %v2569 = vunpack.c.l.b16 %v2530
    %v2570 = vunpack.c.l.b16 %v2531
    %v2571 = vpack.c.b16 %v2556, %v2555
    %v2572 = vpack.c.b16 %v2558, %v2557
    %v2573 = vpack.c.b16 %v2560, %v2559
    %v2574 = vpack.c.b16 %v2562, %v2561
    %v2575 = vpack.c.b16 %v2564, %v2563
    %v2576 = vpack.c.b16 %v2566, %v2565
    %v2577 = vpack.c.b16 %v2568, %v2567
    %v2578 = vpack.c.b16 %v2570, %v2569
    %2587 = vmatprep.subr.bf16.mxu0 0
    %2588 = vmatpush1.bf16.msra.mxu0 %v2578
    %2589 = vmatprep.subr.bf16.mxu0 0
    %2590 = vmatpush1.bf16.msra.mxu0 %v2577
    %2591 = vmatprep.subr.bf16.mxu0 0
    %2592 = vmatpush1.bf16.msra.mxu0 %v2576
    %2593 = vmatprep.subr.bf16.mxu0 0
    %2594 = vmatpush1.bf16.msra.mxu0 %v2575
    %2595 = vmatprep.subr.bf16.mxu0 0
    %2596 = vmatpush1.bf16.msra.mxu0 %v2574
    %2597 = vmatprep.subr.bf16.mxu0 0
    %2598 = vmatpush1.bf16.msra.mxu0 %v2573
    %2599 = vmatprep.subr.bf16.mxu0 0
    %2600 = vmatpush1.bf16.msra.mxu0 %v2572
    %2601 = vmatprep.subr.bf16.mxu0 0
    %2602 = vmatpush1.bf16.msra.mxu0 %v2571
    %2603 = vmatprep.subr.bf16.mxu0 0
    %2604 = vmatpush2.bf16.msra.mxu0 0
    %2605 = vmatprep.subr.bf16.mxu0 0
    %2606 = vmatpush2.bf16.msra.mxu0 0
    %2607 = vmatprep.subr.bf16.mxu0 0
    %2608 = vmatpush2.bf16.msra.mxu0 0
    %2609 = vmatprep.subr.bf16.mxu0 0
    %2610 = vmatpush2.bf16.msra.mxu0 0
    %2611 = vmatprep.subr.bf16.mxu0 0
    %2612 = vmatpush2.bf16.msra.mxu0 0
    %2613 = vmatprep.subr.bf16.mxu0 0
    %2614 = vmatpush2.bf16.msra.mxu0 0
    %2615 = vmatprep.subr.bf16.mxu0 0
    %2616 = vmatpush2.bf16.msra.mxu0 0
    %2617 = vmatprep.subr.bf16.mxu0 0
    %2618 = vmatpush2.bf16.msra.mxu0 0
    %2619 = vmatprep.mubr.bf16.mxu0 0
    %2620 = vmatmul.mubr.bf16.gmra.mxu0 %v1845
    %v2621 = vpop.f32.mrf.mxu0
    %v2622 = vadd.f32 %v2537, %v2621
    %v2623 = vpop.f32.mrf.mxu0
    %v2624 = vpop.f32.mrf.mxu0
    %v2625 = vadd.f32 %v2537, %v2624
    %v2626 = vpop.f32.mrf.mxu0
    %2627 = vdwg.mxu0
    %v2628 = vld [vmem:[#allocation5] sm:$0xf]
    %v2629 = vld [vmem:[#allocation5 + $0x4] sm:$0xf]
    %v2630 = vld [vmem:[#allocation5 + $0x8] sm:$0xf]
    %v2631 = vld [vmem:[#allocation5 + $0xc] sm:$0xf]
    %v2632 = vld [vmem:[#allocation5 + $0x10] sm:$0xf]
    %v2633 = vld [vmem:[#allocation5 + $0x14] sm:$0xf]
    %v2634 = vld [vmem:[#allocation5 + $0x18] sm:$0xf]
    %v2635 = vld [vmem:[#allocation5 + $0x1c] sm:$0xf]
    %v2636 = vld [vmem:[#allocation5 + $0x20] sm:$0xf]
    %v2637 = vld [vmem:[#allocation5 + $0x24] sm:$0xf]
    %v2638 = vld [vmem:[#allocation5 + $0x28] sm:$0xf]
    %v2639 = vld [vmem:[#allocation5 + $0x2c] sm:$0xf]
    %v2640 = vld [vmem:[#allocation5 + $0x30] sm:$0xf]
    %v2641 = vld [vmem:[#allocation5 + $0x34] sm:$0xf]
    %v2642 = vld [vmem:[#allocation5 + $0x38] sm:$0xf]
    %v2643 = vld [vmem:[#allocation5 + $0x3c] sm:$0xf]
    %v2644 = vld [vmem:[%s10] sm:$0x1]
    %v2646 = vlaneseq
    %v2647 = vshrl.u32 %v2646, 7
    %v2648 = vsub.s32 0, %v2647
    %v2649 = vrot.slane %v2644, %v2648
    %v2667 = vunpack.c.l.b16 %v2628
    %v2668 = vunpack.c.l.b16 %v2629
    %v2669 = vunpack.c.l.b16 %v2630
    %v2670 = vunpack.c.l.b16 %v2631
    %v2671 = vunpack.c.l.b16 %v2632
    %v2672 = vunpack.c.l.b16 %v2633
    %v2673 = vunpack.c.l.b16 %v2634
    %v2674 = vunpack.c.l.b16 %v2635
    %v2675 = vunpack.c.l.b16 %v2636
    %v2676 = vunpack.c.l.b16 %v2637
    %v2677 = vunpack.c.l.b16 %v2638
    %v2678 = vunpack.c.l.b16 %v2639
    %v2679 = vunpack.c.l.b16 %v2640
    %v2680 = vunpack.c.l.b16 %v2641
    %v2681 = vunpack.c.l.b16 %v2642
    %v2682 = vunpack.c.l.b16 %v2643
    %v2683 = vpack.c.b16 %v2668, %v2667
    %v2684 = vpack.c.b16 %v2670, %v2669
    %v2685 = vpack.c.b16 %v2672, %v2671
    %v2686 = vpack.c.b16 %v2674, %v2673
    %v2687 = vpack.c.b16 %v2676, %v2675
    %v2688 = vpack.c.b16 %v2678, %v2677
    %v2689 = vpack.c.b16 %v2680, %v2679
    %v2690 = vpack.c.b16 %v2682, %v2681
    %2699 = vmatprep.subr.bf16.mxu0 0
    %2700 = vmatpush1.bf16.msra.mxu0 %v2690
    %2701 = vmatprep.subr.bf16.mxu0 0
    %2702 = vmatpush1.bf16.msra.mxu0 %v2689
    %2703 = vmatprep.subr.bf16.mxu0 0
    %2704 = vmatpush1.bf16.msra.mxu0 %v2688
    %2705 = vmatprep.subr.bf16.mxu0 0
    %2706 = vmatpush1.bf16.msra.mxu0 %v2687
    %2707 = vmatprep.subr.bf16.mxu0 0
    %2708 = vmatpush1.bf16.msra.mxu0 %v2686
    %2709 = vmatprep.subr.bf16.mxu0 0
    %2710 = vmatpush1.bf16.msra.mxu0 %v2685
    %2711 = vmatprep.subr.bf16.mxu0 0
    %2712 = vmatpush1.bf16.msra.mxu0 %v2684
    %2713 = vmatprep.subr.bf16.mxu0 0
    %2714 = vmatpush1.bf16.msra.mxu0 %v2683
    %2715 = vmatprep.subr.bf16.mxu0 0
    %2716 = vmatpush2.bf16.msra.mxu0 0
    %2717 = vmatprep.subr.bf16.mxu0 0
    %2718 = vmatpush2.bf16.msra.mxu0 0
    %2719 = vmatprep.subr.bf16.mxu0 0
    %2720 = vmatpush2.bf16.msra.mxu0 0
    %2721 = vmatprep.subr.bf16.mxu0 0
    %2722 = vmatpush2.bf16.msra.mxu0 0
    %2723 = vmatprep.subr.bf16.mxu0 0
    %2724 = vmatpush2.bf16.msra.mxu0 0
    %2725 = vmatprep.subr.bf16.mxu0 0
    %2726 = vmatpush2.bf16.msra.mxu0 0
    %2727 = vmatprep.subr.bf16.mxu0 0
    %2728 = vmatpush2.bf16.msra.mxu0 0
    %2729 = vmatprep.subr.bf16.mxu0 0
    %2730 = vmatpush2.bf16.msra.mxu0 0
    %2731 = vmatprep.mubr.bf16.mxu0 0
    %2732 = vmatmul.mubr.bf16.gmra.mxu0 %v1846
    %v2733 = vpop.f32.mrf.mxu0
    %v2734 = vadd.f32 %v2649, %v2733
    %v2735 = vpop.f32.mrf.mxu0
    %v2736 = vpop.f32.mrf.mxu0
    %v2737 = vpop.f32.mrf.mxu0
    %2738 = vdwg.mxu0
    %v2739 = vadd.f32 %v2430, %v2622
    %2740 = vst [vmem:[#allocation12] sm:$0x3] %v2739
    %v2741 = vadd.f32 %v2432, %v2625
    %2742 = vst [vmem:[#allocation12 + $0x2] sm:$0x3] %v2741
    %v2743 = vadd.f32 %v2511, %v2734
    %2744 = vst [vmem:[#allocation12 + $0x4] sm:$0x3] %v2743
    // Predicated region
    $region54: #{pixart_combined_timestep_size_embeddings.1} parent=1 // pred_check
      _
    $region55: #{pixart_combined_timestep_size_embeddings.1} parent=1 // pred_check_branch
      %2746 = sbr.rel (0) target = $region57
    $region56: #{pixart_combined_timestep_size_embeddings.1} parent=1 // pred_region
      %s2748 = ssub.s32 96, 96
      %2749 = vsyncadd [#allocation9], %s2748
      %s2751 = sshll.u32 [#allocation12], 4
      %s2752 = int_to_ptr.vmem [resolvable:$true] %s2751
      %2754 = dma.vmem_to_hbm [thread:$0]  %s2752, 96, %s11, [#allocation9]
    $region57: #{pixart_combined_timestep_size_embeddings.1} parent=1 // pred_fallthru
      _
    // Predicated region
    $region58: #{pixart_combined_timestep_size_embeddings.1} parent=1 // pred_check
      _
    $region59: #{pixart_combined_timestep_size_embeddings.1} parent=1 // pred_check_branch
      %2756 = sbr.rel (0) target = $region61
    $region60: #{pixart_combined_timestep_size_embeddings.1} parent=1 // pred_region
      %2757 = dma.done [#allocation9], 96
    $region61: #{pixart_combined_timestep_size_embeddings.1} parent=1 // pred_fallthru
      _
    %2758 = vsyncpa [#allocation8], 1
    %2759 = vsyncpa [#allocation11], 1
    %2760 = vsyncpa [#allocation9], 1
  %2761 = vsyncmov [#allocation6]
  %s2762 = vpop.sfrf %2761
  %p2763 = scmp.eq.s32.totalorder %s2762, 0
  %p2764 = pneg %p2763
  %2766 = shalt.err (%p2764)
  %s2767 = scalar_lea.sflag [#allocation6], 1
  %2768 = vsyncmov %s2767
  %s2769 = vpop.sfrf %2768
  %p2770 = scmp.eq.s32.totalorder %s2769, 0
  %p2771 = pneg %p2770
  %2773 = shalt.err (%p2771)
  %s2774 = scalar_lea.sflag [#allocation6], 2
  %2775 = vsyncmov %s2774
  %s2776 = vpop.sfrf %2775
  %p2777 = scmp.eq.s32.totalorder %s2776, 0
  %p2778 = pneg %p2777
  %2780 = shalt.err (%p2778)

</llo_original>
